<compile_context>
chip_gen: v6e
topology: v6e:2x2x1
jax: 0.10.0
libtpu: 0.0.40
codegen_flags: <defaults>
</compile_context>

<pallas_src>
import functools

import jax
import jax.numpy as jnp
from jax.experimental import pallas as pl
from jax.experimental.pallas import tpu as pltpu


# ----------------------------------------------------------------------------
# Shape bookkeeping
# ----------------------------------------------------------------------------

def _rup8(v):
    return -(-v // 8) * 8


def _layer_lengths(l_in):
    lc1 = l_in - 2; l1 = (lc1 - 1) // 2 + 1        # block 1: conv + pool(1, 2)
    lc2 = l1 - 2;   l2 = (lc2 - 1) // 2 + 1        # block 2: conv + pool(1, 2)
    lc3 = l2 - 2;   l3 = (lc3 - 3) // 2 + 1        # block 3: conv + pool(3, 2)
    l4 = l3 - 2                                    # block 4
    l5 = l4 - 2                                    # block 5
    l6 = l5 - 2                                    # block 6
    return l1, l2, lc3, l3, l4, l5, l6


# ----------------------------------------------------------------------------
# Fused Pallas kernel (B_blk batch elements per grid step, NLC layout)
# ----------------------------------------------------------------------------

def _deepecg_kernel(x_ref, w1, b1, w2, b2, w3, b3, w4, b4, w5, b5, w6, b6,
                    band_ref, wfc_ref, bfc_ref, o_ref,
                    im_scr, act1, act2, act3,
                    *, bb, l_in, c_in, h,
                    l1, l2, lc3, l3, l4, l5, l6, p1, p2, p3p, p6,
                    size, alpha):
    """x_ref: (bb*l_in, c_in) batch block, per-element row pitch l_in.
    w*: (3*C_in, C_out) bf16 im2col weights; b*: (1, C_out) f32.
    band_ref: (h, h) bf16 LRN channel-window matrix.
    wfc_ref:  (l6*h, O) bf16 classifier (torch flatten pre-folded); bfc: (1, O).
    o_ref:    (bb, O) logits for this batch block.
    Scratch (f32): im_scr im2col staging; act1/2/3 layer activations with
    8-aligned per-element row slots (pitches p1/p2/p3p).  Slot-padding rows are
    never read back as valid data, so stale contents there are harmless.
    """
    f32 = jnp.float32
    bf16 = jnp.bfloat16

    def lrn(y):
        # torch LocalResponseNorm(size=5, alpha, beta=0.75, k=1.0):
        #   y / (1 + alpha/size * sum_{|dc|<=2} y^2)^0.75
        # channel-window sum = band matmul on the MXU; ^-0.75 via rsqrt (EUP).
        sq = (y * y).astype(bf16)
        wsum = jnp.dot(sq, band_ref[...], preferred_element_type=f32)
        div = 1.0 + (alpha / size) * wsum
        r = jax.lax.rsqrt(div)                      # div^-0.5
        return y * (r * jnp.sqrt(r))                # div^-0.75  (beta = 0.75)

    def conv(read_tap, cw, l_out, pitch, w_ref, b_ref):
        # im2col: per element, lane-concat the 3 shifted tap slices into
        # (l_out, cw) and store into an 8-aligned slot of `pitch` rows.
        for b in range(bb):
            piece = jnp.concatenate([read_tap(b, t) for t in range(3)], axis=-1)
            im_scr[pl.ds(b * pitch, l_out), pl.ds(0, cw)] = piece
        # ONE stacked MXU matmul: M = bb*pitch, K = cw, N = h; bf16 in, f32 acc.
        lhs = im_scr[pl.ds(0, bb * pitch), pl.ds(0, cw)].astype(bf16)
        y = jnp.dot(lhs, w_ref[...], preferred_element_type=f32)
        return jnp.maximum(y + b_ref[...], 0.0)

    # block 1: conv + ReLU; MaxPool1d(k=1, s=2) folded into stride-2 tap reads.
    act1[...] = conv(lambda b, t: x_ref[pl.ds(b * l_in + t, l1, 2), :],
                     3 * c_in, l1, p1, w1, b1)

    # block 2: conv + ReLU + LRN; trailing MaxPool1d(k=1, s=2) folded into the
    # stride-2 tap reads (subsampling commutes with ReLU / per-position LRN).
    act2[...] = lrn(conv(lambda b, t: act1[pl.ds(b * p1 + t, l2, 2), :],
                         3 * h, l2, p2, w2, b2))

    # block 3: conv + ReLU (kept at pitch p2), then MaxPool1d(k=3, s=2) via
    # three stride-2 VMEM reads per element, stored at pitch p3p.
    act2[...] = conv(lambda b, t: act2[pl.ds(b * p2 + t, lc3, 1), :],
                     3 * h, lc3, p2, w3, b3)
    for b in range(bb):
        m = act2[pl.ds(b * p2 + 0, l3, 2), :]
        m = jnp.maximum(m, act2[pl.ds(b * p2 + 1, l3, 2), :])
        m = jnp.maximum(m, act2[pl.ds(b * p2 + 2, l3, 2), :])
        act3[pl.ds(b * p3p, l3), :] = m

    # block 4: conv + ReLU + LRN.
    act3[...] = lrn(conv(lambda b, t: act3[pl.ds(b * p3p + t, l4, 1), :],
                         3 * h, l4, p3p, w4, b4))
    # block 5: conv + ReLU.
    act3[...] = conv(lambda b, t: act3[pl.ds(b * p3p + t, l5, 1), :],
                     3 * h, l5, p3p, w5, b5)
    # block 6: conv + ReLU + LRN.  Dropout(0.5) is identity at inference.
    # TODO(synk): training-mode stochastic dropout masking is not implemented.
    y6 = lrn(conv(lambda b, t: act3[pl.ds(b * p3p + t, l6, 1), :],
                  3 * h, l6, p6, w6, b6))
    act3[pl.ds(0, bb * p6), :] = y6

    # classifier: gather position l's channels for all bb elements with a
    # stride-p6 read, lane-concat into (bb, l6*h), single MXU matmul against
    # the pre-permuted classifier weight.
    lhs = jnp.concatenate([act3[pl.ds(l, bb, p6), :] for l in range(l6)],
                          axis=-1).astype(bf16)
    o_ref[...] = (jnp.dot(lhs, wfc_ref[...], preferred_element_type=f32)
                  + bfc_ref[...])


# ----------------------------------------------------------------------------
# One-time parameter preprocessing + forward wrapper
# ----------------------------------------------------------------------------

def prepare_params(params, l_in):
    """Weight-layout permutations, im2col flattening, LRN band, bf16 casts."""
    *_, l6 = _layer_lengths(l_in)
    h = params["w1"].shape[0]
    p = {}
    for i in range(1, 7):
        w = params[f"w{i}"]                           # torch (C_out, C_in, K=3)
        cout, cin, kk = w.shape
        # im2col column order is tap-major / channel-minor -> row = t*C_in + c.
        p[f"w{i}"] = (jnp.transpose(w, (2, 1, 0))
                      .reshape(kk * cin, cout).astype(jnp.bfloat16))
        p[f"b{i}"] = params[f"b{i}"].reshape(1, -1).astype(jnp.float32)
    # LRN (size=5) zero-padded channel window as a 0/1 band matrix (exact in bf16).
    lo, hi = 5 // 2, (5 - 1) // 2
    ci = jnp.arange(h)[:, None]
    cj = jnp.arange(h)[None, :]
    p["band"] = ((cj - ci <= lo) & (ci - cj <= hi)).astype(jnp.bfloat16)
    # Fold torch's NCL flatten (feature = c*l6 + l) into the classifier weight
    # so the kernel's L-major lane-concat (feature = l*h + c) contracts directly.
    o_dim, final = params["w_fc"].shape
    assert final == h * l6, (final, h, l6)
    p["wfc"] = (jnp.transpose(params["w_fc"].reshape(o_dim, h, l6), (2, 1, 0))
                .reshape(l6 * h, o_dim).astype(jnp.bfloat16))
    p["bfc"] = params["b_fc"].reshape(1, o_dim).astype(jnp.float32)
    return p


@jax.jit
def deepecg_forward(prep, x_ncl):
    n, c_in, l_in = x_ncl.shape
    l1, l2, lc3, l3, l4, l5, l6 = _layer_lengths(l_in)
    h = prep["band"].shape[0]
    o_dim = prep["bfc"].shape[1]
    p1, p2, p3p, p6 = _rup8(l1), _rup8(l2), _rup8(l3), _rup8(l6)

    # Batch blocking: bb elements per grid step.  Capped at 8; for realistic
    # batch sizes grid >= 2 so ("parallel",) can shard steps across v7x's 2 TCs.
    bb = n if n < 8 else 8
    n_pad = -(-n // bb) * bb
    x_nlc = jnp.transpose(x_ncl, (0, 2, 1))            # NCL -> NLC (once, tiny)
    if n_pad != n:
        x_nlc = jnp.pad(x_nlc, ((0, n_pad - n), (0, 0), (0, 0)))
    x2d = x_nlc.reshape(n_pad * l_in, c_in)            # per-element pitch = l_in

    kernel = functools.partial(
        _deepecg_kernel, bb=bb, l_in=l_in, c_in=c_in, h=h,
        l1=l1, l2=l2, lc3=lc3, l3=l3, l4=l4, l5=l5, l6=l6,
        p1=p1, p2=p2, p3p=p3p, p6=p6, size=5, alpha=2e-4)

    def full(a):
        return pl.BlockSpec(a.shape, lambda i: (0, 0))

    in_specs = [pl.BlockSpec((bb * l_in, c_in), lambda i: (i, 0))]
    operands = [x2d]
    for i in range(1, 7):
        in_specs += [full(prep[f"w{i}"]), full(prep[f"b{i}"])]
        operands += [prep[f"w{i}"], prep[f"b{i}"]]
    in_specs += [full(prep["band"]), full(prep["wfc"]), full(prep["bfc"])]
    operands += [prep["band"], prep["wfc"], prep["bfc"]]

    # VMEM/step (bb=8, L=128, H=32): im2col ~192 KiB + activations ~104 KiB +
    # double-buffered input/weights -- far under 32 MiB scoped / 64 MiB (v7x).
    out = pl.pallas_call(
        kernel,
        out_shape=jax.ShapeDtypeStruct((n_pad, o_dim), jnp.float32),
        grid=(n_pad // bb,),
        in_specs=in_specs,
        out_specs=pl.BlockSpec((bb, o_dim), lambda i: (i, 0)),
        scratch_shapes=[
            pltpu.VMEM((bb * p1, max(3 * c_in, 3 * h)), jnp.float32),  # im2col
            pltpu.VMEM((bb * p1, h), jnp.float32),                     # act1
            pltpu.VMEM((bb * p2, h), jnp.float32),                     # act2
            pltpu.VMEM((bb * p3p, h), jnp.float32),                    # act3
        ],
        compiler_params=pltpu.CompilerParams(
            dimension_semantics=("parallel",)),
    )(*operands)
    return out[:n]


# ----------------------------------------------------------------------------
# Parameter init (torch layout) and pure-JAX reference (mirrors PyTorch, NCL)
# ----------------------------------------------------------------------------

def init_params(key, input_shape, hidden_units, output_shape, final):
    ks = jax.random.split(key, 14)

    def conv(kw, kb, cin, cout):
        w = 0.1 * jax.random.normal(kw, (cout, cin, 3), jnp.float32)   # (O, I, K)
        b = 0.1 * jax.random.normal(kb, (cout,), jnp.float32)
        return w, b

    p = {}
    p["w1"], p["b1"] = conv(ks[0], ks[1], input_shape, hidden_units)
    p["w2"], p["b2"] = conv(ks[2], ks[3], hidden_units, hidden_units)
    p["w3"], p["b3"] = conv(ks[4], ks[5], hidden_units, hidden_units)
    p["w4"], p["b4"] = conv(ks[6], ks[7], hidden_units, hidden_units)
    p["w5"], p["b5"] = conv(ks[8], ks[9], hidden_units, hidden_units)
    p["w6"], p["b6"] = conv(ks[10], ks[11], hidden_units, hidden_units)
    p["w_fc"] = 0.05 * jax.random.normal(ks[12], (output_shape, final), jnp.float32)
    p["b_fc"] = 0.05 * jax.random.normal(ks[13], (output_shape,), jnp.float32)
    return p


def _ref_conv_relu(x_ncl, w_oik, b_o):
    y = jax.lax.conv_general_dilated(
        x_ncl, w_oik, window_strides=(1,), padding="VALID",
        dimension_numbers=("NCH", "OIH", "NCH"),
        precision=jax.lax.Precision.HIGHEST)
    return jnp.maximum(y + b_o[None, :, None], 0.0)


def _ref_lrn(x_ncl, size=5, alpha=2e-4, beta=0.75, k=1.0):
    sq = x_ncl * x_ncl
    lo, hi = size // 2, (size - 1) // 2
    padded = jnp.pad(sq, ((0, 0), (lo, hi), (0, 0)))
    c = x_ncl.shape[1]
    s = sum(padded[:, o:o + c, :] for o in range(size))
    return x_ncl / (k + alpha * s / size) ** beta


def _ref_maxpool(x_ncl, kernel, stride):
    l = x_ncl.shape[2]
    l_out = (l - kernel) // stride + 1
    end = stride * (l_out - 1) + 1
    out = x_ncl[:, :, 0:end:stride]
    for t in range(1, kernel):
        out = jnp.maximum(out, x_ncl[:, :, t:t + end:stride])
    return out


def deepecg_reference(params, x_ncl):
    x = _ref_conv_relu(x_ncl, params["w1"], params["b1"]); x = _ref_maxpool(x, 1, 2)
    x = _ref_conv_relu(x, params["w2"], params["b2"]); x = _ref_lrn(x); x = _ref_maxpool(x, 1, 2)
    x = _ref_conv_relu(x, params["w3"], params["b3"]); x = _ref_maxpool(x, 3, 2)
    x = _ref_conv_relu(x, params["w4"], params["b4"]); x = _ref_lrn(x)
    x = _ref_conv_relu(x, params["w5"], params["b5"])
    x = _ref_conv_relu(x, params["w6"], params["b6"]); x = _ref_lrn(x)
    flat = x.reshape(x.shape[0], -1)
    return flat @ params["w_fc"].T + params["b_fc"][None, :]


# ----------------------------------------------------------------------------
# Main
# ----------------------------------------------------------------------------

if __name__ == "__main__":
    N, C_IN, L = 2, 4, 128
    HIDDEN, OUT_DIM = 32, 5
    *_, L6 = _layer_lengths(L)
    FINAL = HIDDEN * L6                              # == 32 * 8 = 256

    key = jax.random.PRNGKey(0)
    kx, kp = jax.random.split(key)
    x = jax.random.normal(kx, (N, C_IN, L), jnp.float32)      # torch NCL input
    params = init_params(kp, C_IN, HIDDEN, OUT_DIM, FINAL)
    prep = prepare_params(params, L)                           # one-time weight prep

    out = jax.block_until_ready(deepecg_forward(prep, x))
    assert out.shape == (N, OUT_DIM), out.shape

    ref = jax.block_until_ready(deepecg_reference(params, x))
    # Kernel matmuls run bf16-in / f32-accumulate on the MXU; compare against
    # the f32 HIGHEST-precision reference with a correspondingly relaxed
    # tolerance (first conv could be kept f32 if tighter accuracy were needed).
    assert jnp.allclose(out, ref, rtol=1e-2, atol=1e-2), (out, ref)

    print("KERNEL_OK")
</pallas_src>

<mosaic_0001>
module attributes {stable_mosaic.version = 11 : i64} {
  func.func @_deepecg_kernel(%arg0: i32, %arg1: memref<256x4xf32, #tpu.memory_space<vmem>>, %arg2: memref<12x32xbf16, #tpu.memory_space<vmem>>, %arg3: memref<1x32xf32, #tpu.memory_space<vmem>>, %arg4: memref<96x32xbf16, #tpu.memory_space<vmem>>, %arg5: memref<1x32xf32, #tpu.memory_space<vmem>>, %arg6: memref<96x32xbf16, #tpu.memory_space<vmem>>, %arg7: memref<1x32xf32, #tpu.memory_space<vmem>>, %arg8: memref<96x32xbf16, #tpu.memory_space<vmem>>, %arg9: memref<1x32xf32, #tpu.memory_space<vmem>>, %arg10: memref<96x32xbf16, #tpu.memory_space<vmem>>, %arg11: memref<1x32xf32, #tpu.memory_space<vmem>>, %arg12: memref<96x32xbf16, #tpu.memory_space<vmem>>, %arg13: memref<1x32xf32, #tpu.memory_space<vmem>>, %arg14: memref<32x32xbf16, #tpu.memory_space<vmem>>, %arg15: memref<256x5xbf16, #tpu.memory_space<vmem>>, %arg16: memref<1x5xf32, #tpu.memory_space<vmem>>, %arg17: memref<2x5xf32, #tpu.memory_space<vmem>>, %arg18: memref<128x96xf32, #tpu.memory_space<vmem>>, %arg19: memref<128x32xf32, #tpu.memory_space<vmem>>, %arg20: memref<64x32xf32, #tpu.memory_space<vmem>>, %arg21: memref<32x32xf32, #tpu.memory_space<vmem>>) attributes {dimension_semantics = [#tpu.dimension_semantics<parallel>], iteration_bounds = array<i64: 1>, scalar_prefetch = 0 : i64, scratch_operands = 4 : i64, tpu.core_type = #tpu.core_type<tc>, window_params = [{transform_indices = @transform_0, window_bounds = array<i64: 256, 4>}, {pipeline_mode = #tpu.pipeline_mode<synchronous>, transform_indices = @transform_1, window_bounds = array<i64: 12, 32>}, {pipeline_mode = #tpu.pipeline_mode<synchronous>, transform_indices = @transform_2, window_bounds = array<i64: 1, 32>}, {pipeline_mode = #tpu.pipeline_mode<synchronous>, transform_indices = @transform_3, window_bounds = array<i64: 96, 32>}, {pipeline_mode = #tpu.pipeline_mode<synchronous>, transform_indices = @transform_4, window_bounds = array<i64: 1, 32>}, {pipeline_mode = #tpu.pipeline_mode<synchronous>, transform_indices = @transform_5, window_bounds = array<i64: 96, 32>}, {pipeline_mode = #tpu.pipeline_mode<synchronous>, transform_indices = @transform_6, window_bounds = array<i64: 1, 32>}, {pipeline_mode = #tpu.pipeline_mode<synchronous>, transform_indices = @transform_7, window_bounds = array<i64: 96, 32>}, {pipeline_mode = #tpu.pipeline_mode<synchronous>, transform_indices = @transform_8, window_bounds = array<i64: 1, 32>}, {pipeline_mode = #tpu.pipeline_mode<synchronous>, transform_indices = @transform_9, window_bounds = array<i64: 96, 32>}, {pipeline_mode = #tpu.pipeline_mode<synchronous>, transform_indices = @transform_10, window_bounds = array<i64: 1, 32>}, {pipeline_mode = #tpu.pipeline_mode<synchronous>, transform_indices = @transform_11, window_bounds = array<i64: 96, 32>}, {pipeline_mode = #tpu.pipeline_mode<synchronous>, transform_indices = @transform_12, window_bounds = array<i64: 1, 32>}, {pipeline_mode = #tpu.pipeline_mode<synchronous>, transform_indices = @transform_13, window_bounds = array<i64: 32, 32>}, {pipeline_mode = #tpu.pipeline_mode<synchronous>, transform_indices = @transform_14, window_bounds = array<i64: 256, 5>}, {pipeline_mode = #tpu.pipeline_mode<synchronous>, transform_indices = @transform_15, window_bounds = array<i64: 1, 5>}, {transform_indices = @transform_16, window_bounds = array<i64: 2, 5>}]} {
    %c0 = arith.constant 0 : index
    %c0_0 = arith.constant 0 : index
    %0 = tpu.strided_load %arg1[%c0, %c0_0] {strides = array<i32: 2, 1>} : memref<256x4xf32, #tpu.memory_space<vmem>>, vector<63x4xf32>
    %c1 = arith.constant 1 : index
    %c0_1 = arith.constant 0 : index
    %1 = tpu.strided_load %arg1[%c1, %c0_1] {strides = array<i32: 2, 1>} : memref<256x4xf32, #tpu.memory_space<vmem>>, vector<63x4xf32>
    %c2 = arith.constant 2 : index
    %c0_2 = arith.constant 0 : index
    %2 = tpu.strided_load %arg1[%c2, %c0_2] {strides = array<i32: 2, 1>} : memref<256x4xf32, #tpu.memory_space<vmem>>, vector<63x4xf32>
    %3 = tpu.concatenate %0, %1, %2 in 1 : vector<63x4xf32>, vector<63x4xf32>, vector<63x4xf32> -> vector<63x12xf32>
    %c0_3 = arith.constant 0 : index
    %c0_4 = arith.constant 0 : index
    %4 = vector.load %arg18[%c0_3, %c0_4] : memref<128x96xf32, #tpu.memory_space<vmem>>, vector<63x12xf32>
    tpu.vector_store %arg18[%c0_3, %c0_4], %3 {strides = array<i32>} : memref<128x96xf32, #tpu.memory_space<vmem>>, vector<63x12xf32>,
    %c128 = arith.constant 128 : index
    %c0_5 = arith.constant 0 : index
    %5 = tpu.strided_load %arg1[%c128, %c0_5] {strides = array<i32: 2, 1>} : memref<256x4xf32, #tpu.memory_space<vmem>>, vector<63x4xf32>
    %c129 = arith.constant 129 : index
    %c0_6 = arith.constant 0 : index
    %6 = tpu.strided_load %arg1[%c129, %c0_6] {strides = array<i32: 2, 1>} : memref<256x4xf32, #tpu.memory_space<vmem>>, vector<63x4xf32>
    %c130 = arith.constant 130 : index
    %c0_7 = arith.constant 0 : index
    %7 = tpu.strided_load %arg1[%c130, %c0_7] {strides = array<i32: 2, 1>} : memref<256x4xf32, #tpu.memory_space<vmem>>, vector<63x4xf32>
    %8 = tpu.concatenate %5, %6, %7 in 1 : vector<63x4xf32>, vector<63x4xf32>, vector<63x4xf32> -> vector<63x12xf32>
    %c64 = arith.constant 64 : index
    %c0_8 = arith.constant 0 : index
    %9 = vector.load %arg18[%c64, %c0_8] : memref<128x96xf32, #tpu.memory_space<vmem>>, vector<63x12xf32>
    tpu.vector_store %arg18[%c64, %c0_8], %8 {strides = array<i32>} : memref<128x96xf32, #tpu.memory_space<vmem>>, vector<63x12xf32>,
    %c0_9 = arith.constant 0 : index
    %c0_10 = arith.constant 0 : index
    %10 = vector.load %arg18[%c0_9, %c0_10] : memref<128x96xf32, #tpu.memory_space<vmem>>, vector<128x12xf32>
    %11 = arith.truncf %10 : vector<128x12xf32> to vector<128x12xbf16>
    %c0_11 = arith.constant 0 : index
    %c0_12 = arith.constant 0 : index
    %12 = vector.load %arg2[%c0_11, %c0_12] : memref<12x32xbf16, #tpu.memory_space<vmem>>, vector<12x32xbf16>
    %cst = arith.constant dense<0.000000e+00> : vector<128x32xf32>
    %13 = tpu.matmul %11, %12, %cst {dimension_numbers = #tpu.dot_dimension_numbers<[1], [0], [0], [1], [0, 0, 1, 1], [], []>} : vector<128x12xbf16>, vector<12x32xbf16>, vector<128x32xf32> -> vector<128x32xf32>
    %c0_13 = arith.constant 0 : index
    %c0_14 = arith.constant 0 : index
    %14 = vector.load %arg3[%c0_13, %c0_14] : memref<1x32xf32, #tpu.memory_space<vmem>>, vector<1x32xf32>
    %15 = vector.broadcast %14 : vector<1x32xf32> to vector<128x32xf32>
    %16 = arith.addf %13, %15 : vector<128x32xf32>
    %cst_15 = arith.constant 0.000000e+00 : f32
    %17 = vector.broadcast %cst_15 : f32 to vector<128x32xf32>
    %18 = arith.maximumf %16, %17 : vector<128x32xf32>
    %c0_16 = arith.constant 0 : index
    %c0_17 = arith.constant 0 : index
    %19 = vector.load %arg19[%c0_16, %c0_17] : memref<128x32xf32, #tpu.memory_space<vmem>>, vector<128x32xf32>
    tpu.vector_store %arg19[%c0_16, %c0_17], %18 {strides = array<i32>} : memref<128x32xf32, #tpu.memory_space<vmem>>, vector<128x32xf32>,
    %c0_18 = arith.constant 0 : index
    %c0_19 = arith.constant 0 : index
    %20 = tpu.strided_load %arg19[%c0_18, %c0_19] {strides = array<i32: 2, 1>} : memref<128x32xf32, #tpu.memory_space<vmem>>, vector<31x32xf32>
    %c1_20 = arith.constant 1 : index
    %c0_21 = arith.constant 0 : index
    %21 = tpu.strided_load %arg19[%c1_20, %c0_21] {strides = array<i32: 2, 1>} : memref<128x32xf32, #tpu.memory_space<vmem>>, vector<31x32xf32>
    %c2_22 = arith.constant 2 : index
    %c0_23 = arith.constant 0 : index
    %22 = tpu.strided_load %arg19[%c2_22, %c0_23] {strides = array<i32: 2, 1>} : memref<128x32xf32, #tpu.memory_space<vmem>>, vector<31x32xf32>
    %23 = tpu.concatenate %20, %21, %22 in 1 : vector<31x32xf32>, vector<31x32xf32>, vector<31x32xf32> -> vector<31x96xf32>
    %c0_24 = arith.constant 0 : index
    %c0_25 = arith.constant 0 : index
    %24 = vector.load %arg18[%c0_24, %c0_25] : memref<128x96xf32, #tpu.memory_space<vmem>>, vector<31x96xf32>
    tpu.vector_store %arg18[%c0_24, %c0_25], %23 {strides = array<i32>} : memref<128x96xf32, #tpu.memory_space<vmem>>, vector<31x96xf32>,
    %c64_26 = arith.constant 64 : index
    %c0_27 = arith.constant 0 : index
    %25 = tpu.strided_load %arg19[%c64_26, %c0_27] {strides = array<i32: 2, 1>} : memref<128x32xf32, #tpu.memory_space<vmem>>, vector<31x32xf32>
    %c65 = arith.constant 65 : index
    %c0_28 = arith.constant 0 : index
    %26 = tpu.strided_load %arg19[%c65, %c0_28] {strides = array<i32: 2, 1>} : memref<128x32xf32, #tpu.memory_space<vmem>>, vector<31x32xf32>
    %c66 = arith.constant 66 : index
    %c0_29 = arith.constant 0 : index
    %27 = tpu.strided_load %arg19[%c66, %c0_29] {strides = array<i32: 2, 1>} : memref<128x32xf32, #tpu.memory_space<vmem>>, vector<31x32xf32>
    %28 = tpu.concatenate %25, %26, %27 in 1 : vector<31x32xf32>, vector<31x32xf32>, vector<31x32xf32> -> vector<31x96xf32>
    %c32 = arith.constant 32 : index
    %c0_30 = arith.constant 0 : index
    %29 = vector.load %arg18[%c32, %c0_30] : memref<128x96xf32, #tpu.memory_space<vmem>>, vector<31x96xf32>
    tpu.vector_store %arg18[%c32, %c0_30], %28 {strides = array<i32>} : memref<128x96xf32, #tpu.memory_space<vmem>>, vector<31x96xf32>,
    %c0_31 = arith.constant 0 : index
    %c0_32 = arith.constant 0 : index
    %30 = vector.load %arg18[%c0_31, %c0_32] : memref<128x96xf32, #tpu.memory_space<vmem>>, vector<64x96xf32>
    %31 = arith.truncf %30 : vector<64x96xf32> to vector<64x96xbf16>
    %c0_33 = arith.constant 0 : index
    %c0_34 = arith.constant 0 : index
    %32 = vector.load %arg4[%c0_33, %c0_34] : memref<96x32xbf16, #tpu.memory_space<vmem>>, vector<96x32xbf16>
    %cst_35 = arith.constant dense<0.000000e+00> : vector<64x32xf32>
    %33 = tpu.matmul %31, %32, %cst_35 {dimension_numbers = #tpu.dot_dimension_numbers<[1], [0], [0], [1], [0, 0, 1, 1], [], []>} : vector<64x96xbf16>, vector<96x32xbf16>, vector<64x32xf32> -> vector<64x32xf32>
    %c0_36 = arith.constant 0 : index
    %c0_37 = arith.constant 0 : index
    %34 = vector.load %arg5[%c0_36, %c0_37] : memref<1x32xf32, #tpu.memory_space<vmem>>, vector<1x32xf32>
    %35 = vector.broadcast %34 : vector<1x32xf32> to vector<64x32xf32>
    %36 = arith.addf %33, %35 : vector<64x32xf32>
    %cst_38 = arith.constant 0.000000e+00 : f32
    %37 = vector.broadcast %cst_38 : f32 to vector<64x32xf32>
    %38 = arith.maximumf %36, %37 : vector<64x32xf32>
    %39 = arith.mulf %38, %38 : vector<64x32xf32>
    %40 = arith.truncf %39 : vector<64x32xf32> to vector<64x32xbf16>
    %c0_39 = arith.constant 0 : index
    %c0_40 = arith.constant 0 : index
    %41 = vector.load %arg14[%c0_39, %c0_40] : memref<32x32xbf16, #tpu.memory_space<vmem>>, vector<32x32xbf16>
    %cst_41 = arith.constant dense<0.000000e+00> : vector<64x32xf32>
    %42 = tpu.matmul %40, %41, %cst_41 {dimension_numbers = #tpu.dot_dimension_numbers<[1], [0], [0], [1], [0, 0, 1, 1], [], []>} : vector<64x32xbf16>, vector<32x32xbf16>, vector<64x32xf32> -> vector<64x32xf32>
    %cst_42 = arith.constant 4.000000e-05 : f32
    %43 = vector.broadcast %cst_42 : f32 to vector<64x32xf32>
    %44 = arith.mulf %43, %42 : vector<64x32xf32>
    %cst_43 = arith.constant 1.000000e+00 : f32
    %45 = vector.broadcast %cst_43 : f32 to vector<64x32xf32>
    %46 = arith.addf %45, %44 : vector<64x32xf32>
    %47 = math.rsqrt %46 : vector<64x32xf32>
    %48 = math.sqrt %47 : vector<64x32xf32>
    %49 = arith.mulf %47, %48 : vector<64x32xf32>
    %50 = arith.mulf %38, %49 : vector<64x32xf32>
    %c0_44 = arith.constant 0 : index
    %c0_45 = arith.constant 0 : index
    %51 = vector.load %arg20[%c0_44, %c0_45] : memref<64x32xf32, #tpu.memory_space<vmem>>, vector<64x32xf32>
    tpu.vector_store %arg20[%c0_44, %c0_45], %50 {strides = array<i32>} : memref<64x32xf32, #tpu.memory_space<vmem>>, vector<64x32xf32>,
    %c0_46 = arith.constant 0 : index
    %c0_47 = arith.constant 0 : index
    %52 = vector.load %arg20[%c0_46, %c0_47] : memref<64x32xf32, #tpu.memory_space<vmem>>, vector<29x32xf32>
    %c1_48 = arith.constant 1 : index
    %c0_49 = arith.constant 0 : index
    %53 = vector.load %arg20[%c1_48, %c0_49] : memref<64x32xf32, #tpu.memory_space<vmem>>, vector<29x32xf32>
    %c2_50 = arith.constant 2 : index
    %c0_51 = arith.constant 0 : index
    %54 = vector.load %arg20[%c2_50, %c0_51] : memref<64x32xf32, #tpu.memory_space<vmem>>, vector<29x32xf32>
    %55 = tpu.concatenate %52, %53, %54 in 1 : vector<29x32xf32>, vector<29x32xf32>, vector<29x32xf32> -> vector<29x96xf32>
    %c0_52 = arith.constant 0 : index
    %c0_53 = arith.constant 0 : index
    %56 = vector.load %arg18[%c0_52, %c0_53] : memref<128x96xf32, #tpu.memory_space<vmem>>, vector<29x96xf32>
    tpu.vector_store %arg18[%c0_52, %c0_53], %55 {strides = array<i32>} : memref<128x96xf32, #tpu.memory_space<vmem>>, vector<29x96xf32>,
    %c32_54 = arith.constant 32 : index
    %c0_55 = arith.constant 0 : index
    %57 = vector.load %arg20[%c32_54, %c0_55] : memref<64x32xf32, #tpu.memory_space<vmem>>, vector<29x32xf32>
    %c33 = arith.constant 33 : index
    %c0_56 = arith.constant 0 : index
    %58 = vector.load %arg20[%c33, %c0_56] : memref<64x32xf32, #tpu.memory_space<vmem>>, vector<29x32xf32>
    %c34 = arith.constant 34 : index
    %c0_57 = arith.constant 0 : index
    %59 = vector.load %arg20[%c34, %c0_57] : memref<64x32xf32, #tpu.memory_space<vmem>>, vector<29x32xf32>
    %60 = tpu.concatenate %57, %58, %59 in 1 : vector<29x32xf32>, vector<29x32xf32>, vector<29x32xf32> -> vector<29x96xf32>
    %c32_58 = arith.constant 32 : index
    %c0_59 = arith.constant 0 : index
    %61 = vector.load %arg18[%c32_58, %c0_59] : memref<128x96xf32, #tpu.memory_space<vmem>>, vector<29x96xf32>
    tpu.vector_store %arg18[%c32_58, %c0_59], %60 {strides = array<i32>} : memref<128x96xf32, #tpu.memory_space<vmem>>, vector<29x96xf32>,
    %c0_60 = arith.constant 0 : index
    %c0_61 = arith.constant 0 : index
    %62 = vector.load %arg18[%c0_60, %c0_61] : memref<128x96xf32, #tpu.memory_space<vmem>>, vector<64x96xf32>
    %63 = arith.truncf %62 : vector<64x96xf32> to vector<64x96xbf16>
    %c0_62 = arith.constant 0 : index
    %c0_63 = arith.constant 0 : index
    %64 = vector.load %arg6[%c0_62, %c0_63] : memref<96x32xbf16, #tpu.memory_space<vmem>>, vector<96x32xbf16>
    %cst_64 = arith.constant dense<0.000000e+00> : vector<64x32xf32>
    %65 = tpu.matmul %63, %64, %cst_64 {dimension_numbers = #tpu.dot_dimension_numbers<[1], [0], [0], [1], [0, 0, 1, 1], [], []>} : vector<64x96xbf16>, vector<96x32xbf16>, vector<64x32xf32> -> vector<64x32xf32>
    %c0_65 = arith.constant 0 : index
    %c0_66 = arith.constant 0 : index
    %66 = vector.load %arg7[%c0_65, %c0_66] : memref<1x32xf32, #tpu.memory_space<vmem>>, vector<1x32xf32>
    %67 = vector.broadcast %66 : vector<1x32xf32> to vector<64x32xf32>
    %68 = arith.addf %65, %67 : vector<64x32xf32>
    %cst_67 = arith.constant 0.000000e+00 : f32
    %69 = vector.broadcast %cst_67 : f32 to vector<64x32xf32>
    %70 = arith.maximumf %68, %69 : vector<64x32xf32>
    %c0_68 = arith.constant 0 : index
    %c0_69 = arith.constant 0 : index
    %71 = vector.load %arg20[%c0_68, %c0_69] : memref<64x32xf32, #tpu.memory_space<vmem>>, vector<64x32xf32>
    tpu.vector_store %arg20[%c0_68, %c0_69], %70 {strides = array<i32>} : memref<64x32xf32, #tpu.memory_space<vmem>>, vector<64x32xf32>,
    %c0_70 = arith.constant 0 : index
    %c0_71 = arith.constant 0 : index
    %72 = tpu.strided_load %arg20[%c0_70, %c0_71] {strides = array<i32: 2, 1>} : memref<64x32xf32, #tpu.memory_space<vmem>>, vector<14x32xf32>
    %c1_72 = arith.constant 1 : index
    %c0_73 = arith.constant 0 : index
    %73 = tpu.strided_load %arg20[%c1_72, %c0_73] {strides = array<i32: 2, 1>} : memref<64x32xf32, #tpu.memory_space<vmem>>, vector<14x32xf32>
    %74 = arith.maximumf %72, %73 : vector<14x32xf32>
    %c2_74 = arith.constant 2 : index
    %c0_75 = arith.constant 0 : index
    %75 = tpu.strided_load %arg20[%c2_74, %c0_75] {strides = array<i32: 2, 1>} : memref<64x32xf32, #tpu.memory_space<vmem>>, vector<14x32xf32>
    %76 = arith.maximumf %74, %75 : vector<14x32xf32>
    %c0_76 = arith.constant 0 : index
    %c0_77 = arith.constant 0 : index
    %77 = vector.load %arg21[%c0_76, %c0_77] : memref<32x32xf32, #tpu.memory_space<vmem>>, vector<14x32xf32>
    tpu.vector_store %arg21[%c0_76, %c0_77], %76 {strides = array<i32>} : memref<32x32xf32, #tpu.memory_space<vmem>>, vector<14x32xf32>,
    %c32_78 = arith.constant 32 : index
    %c0_79 = arith.constant 0 : index
    %78 = tpu.strided_load %arg20[%c32_78, %c0_79] {strides = array<i32: 2, 1>} : memref<64x32xf32, #tpu.memory_space<vmem>>, vector<14x32xf32>
    %c33_80 = arith.constant 33 : index
    %c0_81 = arith.constant 0 : index
    %79 = tpu.strided_load %arg20[%c33_80, %c0_81] {strides = array<i32: 2, 1>} : memref<64x32xf32, #tpu.memory_space<vmem>>, vector<14x32xf32>
    %80 = arith.maximumf %78, %79 : vector<14x32xf32>
    %c34_82 = arith.constant 34 : index
    %c0_83 = arith.constant 0 : index
    %81 = tpu.strided_load %arg20[%c34_82, %c0_83] {strides = array<i32: 2, 1>} : memref<64x32xf32, #tpu.memory_space<vmem>>, vector<14x32xf32>
    %82 = arith.maximumf %80, %81 : vector<14x32xf32>
    %c16 = arith.constant 16 : index
    %c0_84 = arith.constant 0 : index
    %83 = vector.load %arg21[%c16, %c0_84] : memref<32x32xf32, #tpu.memory_space<vmem>>, vector<14x32xf32>
    tpu.vector_store %arg21[%c16, %c0_84], %82 {strides = array<i32>} : memref<32x32xf32, #tpu.memory_space<vmem>>, vector<14x32xf32>,
    %c0_85 = arith.constant 0 : index
    %c0_86 = arith.constant 0 : index
    %84 = vector.load %arg21[%c0_85, %c0_86] : memref<32x32xf32, #tpu.memory_space<vmem>>, vector<12x32xf32>
    %c1_87 = arith.constant 1 : index
    %c0_88 = arith.constant 0 : index
    %85 = vector.load %arg21[%c1_87, %c0_88] : memref<32x32xf32, #tpu.memory_space<vmem>>, vector<12x32xf32>
    %c2_89 = arith.constant 2 : index
    %c0_90 = arith.constant 0 : index
    %86 = vector.load %arg21[%c2_89, %c0_90] : memref<32x32xf32, #tpu.memory_space<vmem>>, vector<12x32xf32>
    %87 = tpu.concatenate %84, %85, %86 in 1 : vector<12x32xf32>, vector<12x32xf32>, vector<12x32xf32> -> vector<12x96xf32>
    %c0_91 = arith.constant 0 : index
    %c0_92 = arith.constant 0 : index
    %88 = vector.load %arg18[%c0_91, %c0_92] : memref<128x96xf32, #tpu.memory_space<vmem>>, vector<12x96xf32>
    tpu.vector_store %arg18[%c0_91, %c0_92], %87 {strides = array<i32>} : memref<128x96xf32, #tpu.memory_space<vmem>>, vector<12x96xf32>,
    %c16_93 = arith.constant 16 : index
    %c0_94 = arith.constant 0 : index
    %89 = vector.load %arg21[%c16_93, %c0_94] : memref<32x32xf32, #tpu.memory_space<vmem>>, vector<12x32xf32>
    %c17 = arith.constant 17 : index
    %c0_95 = arith.constant 0 : index
    %90 = vector.load %arg21[%c17, %c0_95] : memref<32x32xf32, #tpu.memory_space<vmem>>, vector<12x32xf32>
    %c18 = arith.constant 18 : index
    %c0_96 = arith.constant 0 : index
    %91 = vector.load %arg21[%c18, %c0_96] : memref<32x32xf32, #tpu.memory_space<vmem>>, vector<12x32xf32>
    %92 = tpu.concatenate %89, %90, %91 in 1 : vector<12x32xf32>, vector<12x32xf32>, vector<12x32xf32> -> vector<12x96xf32>
    %c16_97 = arith.constant 16 : index
    %c0_98 = arith.constant 0 : index
    %93 = vector.load %arg18[%c16_97, %c0_98] : memref<128x96xf32, #tpu.memory_space<vmem>>, vector<12x96xf32>
    tpu.vector_store %arg18[%c16_97, %c0_98], %92 {strides = array<i32>} : memref<128x96xf32, #tpu.memory_space<vmem>>, vector<12x96xf32>,
    %c0_99 = arith.constant 0 : index
    %c0_100 = arith.constant 0 : index
    %94 = vector.load %arg18[%c0_99, %c0_100] : memref<128x96xf32, #tpu.memory_space<vmem>>, vector<32x96xf32>
    %95 = arith.truncf %94 : vector<32x96xf32> to vector<32x96xbf16>
    %c0_101 = arith.constant 0 : index
    %c0_102 = arith.constant 0 : index
    %96 = vector.load %arg8[%c0_101, %c0_102] : memref<96x32xbf16, #tpu.memory_space<vmem>>, vector<96x32xbf16>
    %cst_103 = arith.constant dense<0.000000e+00> : vector<32x32xf32>
    %97 = tpu.matmul %95, %96, %cst_103 {dimension_numbers = #tpu.dot_dimension_numbers<[1], [0], [0], [1], [0, 0, 1, 1], [], []>} : vector<32x96xbf16>, vector<96x32xbf16>, vector<32x32xf32> -> vector<32x32xf32>
    %c0_104 = arith.constant 0 : index
    %c0_105 = arith.constant 0 : index
    %98 = vector.load %arg9[%c0_104, %c0_105] : memref<1x32xf32, #tpu.memory_space<vmem>>, vector<1x32xf32>
    %99 = vector.broadcast %98 : vector<1x32xf32> to vector<32x32xf32>
    %100 = arith.addf %97, %99 : vector<32x32xf32>
    %cst_106 = arith.constant 0.000000e+00 : f32
    %101 = vector.broadcast %cst_106 : f32 to vector<32x32xf32>
    %102 = arith.maximumf %100, %101 : vector<32x32xf32>
    %103 = arith.mulf %102, %102 : vector<32x32xf32>
    %104 = arith.truncf %103 : vector<32x32xf32> to vector<32x32xbf16>
    %c0_107 = arith.constant 0 : index
    %c0_108 = arith.constant 0 : index
    %105 = vector.load %arg14[%c0_107, %c0_108] : memref<32x32xbf16, #tpu.memory_space<vmem>>, vector<32x32xbf16>
    %cst_109 = arith.constant dense<0.000000e+00> : vector<32x32xf32>
    %106 = tpu.matmul %104, %105, %cst_109 {dimension_numbers = #tpu.dot_dimension_numbers<[1], [0], [0], [1], [0, 0, 1, 1], [], []>} : vector<32x32xbf16>, vector<32x32xbf16>, vector<32x32xf32> -> vector<32x32xf32>
    %cst_110 = arith.constant 4.000000e-05 : f32
    %107 = vector.broadcast %cst_110 : f32 to vector<32x32xf32>
    %108 = arith.mulf %107, %106 : vector<32x32xf32>
    %cst_111 = arith.constant 1.000000e+00 : f32
    %109 = vector.broadcast %cst_111 : f32 to vector<32x32xf32>
    %110 = arith.addf %109, %108 : vector<32x32xf32>
    %111 = math.rsqrt %110 : vector<32x32xf32>
    %112 = math.sqrt %111 : vector<32x32xf32>
    %113 = arith.mulf %111, %112 : vector<32x32xf32>
    %114 = arith.mulf %102, %113 : vector<32x32xf32>
    %c0_112 = arith.constant 0 : index
    %c0_113 = arith.constant 0 : index
    %115 = vector.load %arg21[%c0_112, %c0_113] : memref<32x32xf32, #tpu.memory_space<vmem>>, vector<32x32xf32>
    tpu.vector_store %arg21[%c0_112, %c0_113], %114 {strides = array<i32>} : memref<32x32xf32, #tpu.memory_space<vmem>>, vector<32x32xf32>,
    %c0_114 = arith.constant 0 : index
    %c0_115 = arith.constant 0 : index
    %116 = vector.load %arg21[%c0_114, %c0_115] : memref<32x32xf32, #tpu.memory_space<vmem>>, vector<10x32xf32>
    %c1_116 = arith.constant 1 : index
    %c0_117 = arith.constant 0 : index
    %117 = vector.load %arg21[%c1_116, %c0_117] : memref<32x32xf32, #tpu.memory_space<vmem>>, vector<10x32xf32>
    %c2_118 = arith.constant 2 : index
    %c0_119 = arith.constant 0 : index
    %118 = vector.load %arg21[%c2_118, %c0_119] : memref<32x32xf32, #tpu.memory_space<vmem>>, vector<10x32xf32>
    %119 = tpu.concatenate %116, %117, %118 in 1 : vector<10x32xf32>, vector<10x32xf32>, vector<10x32xf32> -> vector<10x96xf32>
    %c0_120 = arith.constant 0 : index
    %c0_121 = arith.constant 0 : index
    %120 = vector.load %arg18[%c0_120, %c0_121] : memref<128x96xf32, #tpu.memory_space<vmem>>, vector<10x96xf32>
    tpu.vector_store %arg18[%c0_120, %c0_121], %119 {strides = array<i32>} : memref<128x96xf32, #tpu.memory_space<vmem>>, vector<10x96xf32>,
    %c16_122 = arith.constant 16 : index
    %c0_123 = arith.constant 0 : index
    %121 = vector.load %arg21[%c16_122, %c0_123] : memref<32x32xf32, #tpu.memory_space<vmem>>, vector<10x32xf32>
    %c17_124 = arith.constant 17 : index
    %c0_125 = arith.constant 0 : index
    %122 = vector.load %arg21[%c17_124, %c0_125] : memref<32x32xf32, #tpu.memory_space<vmem>>, vector<10x32xf32>
    %c18_126 = arith.constant 18 : index
    %c0_127 = arith.constant 0 : index
    %123 = vector.load %arg21[%c18_126, %c0_127] : memref<32x32xf32, #tpu.memory_space<vmem>>, vector<10x32xf32>
    %124 = tpu.concatenate %121, %122, %123 in 1 : vector<10x32xf32>, vector<10x32xf32>, vector<10x32xf32> -> vector<10x96xf32>
    %c16_128 = arith.constant 16 : index
    %c0_129 = arith.constant 0 : index
    %125 = vector.load %arg18[%c16_128, %c0_129] : memref<128x96xf32, #tpu.memory_space<vmem>>, vector<10x96xf32>
    tpu.vector_store %arg18[%c16_128, %c0_129], %124 {strides = array<i32>} : memref<128x96xf32, #tpu.memory_space<vmem>>, vector<10x96xf32>,
    %c0_130 = arith.constant 0 : index
    %c0_131 = arith.constant 0 : index
    %126 = vector.load %arg18[%c0_130, %c0_131] : memref<128x96xf32, #tpu.memory_space<vmem>>, vector<32x96xf32>
    %127 = arith.truncf %126 : vector<32x96xf32> to vector<32x96xbf16>
    %c0_132 = arith.constant 0 : index
    %c0_133 = arith.constant 0 : index
    %128 = vector.load %arg10[%c0_132, %c0_133] : memref<96x32xbf16, #tpu.memory_space<vmem>>, vector<96x32xbf16>
    %cst_134 = arith.constant dense<0.000000e+00> : vector<32x32xf32>
    %129 = tpu.matmul %127, %128, %cst_134 {dimension_numbers = #tpu.dot_dimension_numbers<[1], [0], [0], [1], [0, 0, 1, 1], [], []>} : vector<32x96xbf16>, vector<96x32xbf16>, vector<32x32xf32> -> vector<32x32xf32>
    %c0_135 = arith.constant 0 : index
    %c0_136 = arith.constant 0 : index
    %130 = vector.load %arg11[%c0_135, %c0_136] : memref<1x32xf32, #tpu.memory_space<vmem>>, vector<1x32xf32>
    %131 = vector.broadcast %130 : vector<1x32xf32> to vector<32x32xf32>
    %132 = arith.addf %129, %131 : vector<32x32xf32>
    %cst_137 = arith.constant 0.000000e+00 : f32
    %133 = vector.broadcast %cst_137 : f32 to vector<32x32xf32>
    %134 = arith.maximumf %132, %133 : vector<32x32xf32>
    %c0_138 = arith.constant 0 : index
    %c0_139 = arith.constant 0 : index
    %135 = vector.load %arg21[%c0_138, %c0_139] : memref<32x32xf32, #tpu.memory_space<vmem>>, vector<32x32xf32>
    tpu.vector_store %arg21[%c0_138, %c0_139], %134 {strides = array<i32>} : memref<32x32xf32, #tpu.memory_space<vmem>>, vector<32x32xf32>,
    %c0_140 = arith.constant 0 : index
    %c0_141 = arith.constant 0 : index
    %136 = vector.load %arg21[%c0_140, %c0_141] : memref<32x32xf32, #tpu.memory_space<vmem>>, vector<8x32xf32>
    %c1_142 = arith.constant 1 : index
    %c0_143 = arith.constant 0 : index
    %137 = vector.load %arg21[%c1_142, %c0_143] : memref<32x32xf32, #tpu.memory_space<vmem>>, vector<8x32xf32>
    %c2_144 = arith.constant 2 : index
    %c0_145 = arith.constant 0 : index
    %138 = vector.load %arg21[%c2_144, %c0_145] : memref<32x32xf32, #tpu.memory_space<vmem>>, vector<8x32xf32>
    %139 = tpu.concatenate %136, %137, %138 in 1 : vector<8x32xf32>, vector<8x32xf32>, vector<8x32xf32> -> vector<8x96xf32>
    %c0_146 = arith.constant 0 : index
    %c0_147 = arith.constant 0 : index
    %140 = vector.load %arg18[%c0_146, %c0_147] : memref<128x96xf32, #tpu.memory_space<vmem>>, vector<8x96xf32>
    tpu.vector_store %arg18[%c0_146, %c0_147], %139 {strides = array<i32>} : memref<128x96xf32, #tpu.memory_space<vmem>>, vector<8x96xf32>,
    %c16_148 = arith.constant 16 : index
    %c0_149 = arith.constant 0 : index
    %141 = vector.load %arg21[%c16_148, %c0_149] : memref<32x32xf32, #tpu.memory_space<vmem>>, vector<8x32xf32>
    %c17_150 = arith.constant 17 : index
    %c0_151 = arith.constant 0 : index
    %142 = vector.load %arg21[%c17_150, %c0_151] : memref<32x32xf32, #tpu.memory_space<vmem>>, vector<8x32xf32>
    %c18_152 = arith.constant 18 : index
    %c0_153 = arith.constant 0 : index
    %143 = vector.load %arg21[%c18_152, %c0_153] : memref<32x32xf32, #tpu.memory_space<vmem>>, vector<8x32xf32>
    %144 = tpu.concatenate %141, %142, %143 in 1 : vector<8x32xf32>, vector<8x32xf32>, vector<8x32xf32> -> vector<8x96xf32>
    %c8 = arith.constant 8 : index
    %c0_154 = arith.constant 0 : index
    %145 = vector.load %arg18[%c8, %c0_154] : memref<128x96xf32, #tpu.memory_space<vmem>>, vector<8x96xf32>
    tpu.vector_store %arg18[%c8, %c0_154], %144 {strides = array<i32>} : memref<128x96xf32, #tpu.memory_space<vmem>>, vector<8x96xf32>,
    %c0_155 = arith.constant 0 : index
    %c0_156 = arith.constant 0 : index
    %146 = vector.load %arg18[%c0_155, %c0_156] : memref<128x96xf32, #tpu.memory_space<vmem>>, vector<16x96xf32>
    %147 = arith.truncf %146 : vector<16x96xf32> to vector<16x96xbf16>
    %c0_157 = arith.constant 0 : index
    %c0_158 = arith.constant 0 : index
    %148 = vector.load %arg12[%c0_157, %c0_158] : memref<96x32xbf16, #tpu.memory_space<vmem>>, vector<96x32xbf16>
    %cst_159 = arith.constant dense<0.000000e+00> : vector<16x32xf32>
    %149 = tpu.matmul %147, %148, %cst_159 {dimension_numbers = #tpu.dot_dimension_numbers<[1], [0], [0], [1], [0, 0, 1, 1], [], []>} : vector<16x96xbf16>, vector<96x32xbf16>, vector<16x32xf32> -> vector<16x32xf32>
    %c0_160 = arith.constant 0 : index
    %c0_161 = arith.constant 0 : index
    %150 = vector.load %arg13[%c0_160, %c0_161] : memref<1x32xf32, #tpu.memory_space<vmem>>, vector<1x32xf32>
    %151 = vector.broadcast %150 : vector<1x32xf32> to vector<16x32xf32>
    %152 = arith.addf %149, %151 : vector<16x32xf32>
    %cst_162 = arith.constant 0.000000e+00 : f32
    %153 = vector.broadcast %cst_162 : f32 to vector<16x32xf32>
    %154 = arith.maximumf %152, %153 : vector<16x32xf32>
    %155 = arith.mulf %154, %154 : vector<16x32xf32>
    %156 = arith.truncf %155 : vector<16x32xf32> to vector<16x32xbf16>
    %c0_163 = arith.constant 0 : index
    %c0_164 = arith.constant 0 : index
    %157 = vector.load %arg14[%c0_163, %c0_164] : memref<32x32xbf16, #tpu.memory_space<vmem>>, vector<32x32xbf16>
    %cst_165 = arith.constant dense<0.000000e+00> : vector<16x32xf32>
    %158 = tpu.matmul %156, %157, %cst_165 {dimension_numbers = #tpu.dot_dimension_numbers<[1], [0], [0], [1], [0, 0, 1, 1], [], []>} : vector<16x32xbf16>, vector<32x32xbf16>, vector<16x32xf32> -> vector<16x32xf32>
    %cst_166 = arith.constant 4.000000e-05 : f32
    %159 = vector.broadcast %cst_166 : f32 to vector<16x32xf32>
    %160 = arith.mulf %159, %158 : vector<16x32xf32>
    %cst_167 = arith.constant 1.000000e+00 : f32
    %161 = vector.broadcast %cst_167 : f32 to vector<16x32xf32>
    %162 = arith.addf %161, %160 : vector<16x32xf32>
    %163 = math.rsqrt %162 : vector<16x32xf32>
    %164 = math.sqrt %163 : vector<16x32xf32>
    %165 = arith.mulf %163, %164 : vector<16x32xf32>
    %166 = arith.mulf %154, %165 : vector<16x32xf32>
    %c0_168 = arith.constant 0 : index
    %c0_169 = arith.constant 0 : index
    %167 = vector.load %arg21[%c0_168, %c0_169] : memref<32x32xf32, #tpu.memory_space<vmem>>, vector<16x32xf32>
    tpu.vector_store %arg21[%c0_168, %c0_169], %166 {strides = array<i32>} : memref<32x32xf32, #tpu.memory_space<vmem>>, vector<16x32xf32>,
    %c0_170 = arith.constant 0 : index
    %c0_171 = arith.constant 0 : index
    %168 = tpu.strided_load %arg21[%c0_170, %c0_171] {strides = array<i32: 8, 1>} : memref<32x32xf32, #tpu.memory_space<vmem>>, vector<2x32xf32>
    %c1_172 = arith.constant 1 : index
    %c0_173 = arith.constant 0 : index
    %169 = tpu.strided_load %arg21[%c1_172, %c0_173] {strides = array<i32: 8, 1>} : memref<32x32xf32, #tpu.memory_space<vmem>>, vector<2x32xf32>
    %c2_174 = arith.constant 2 : index
    %c0_175 = arith.constant 0 : index
    %170 = tpu.strided_load %arg21[%c2_174, %c0_175] {strides = array<i32: 8, 1>} : memref<32x32xf32, #tpu.memory_space<vmem>>, vector<2x32xf32>
    %c3 = arith.constant 3 : index
    %c0_176 = arith.constant 0 : index
    %171 = tpu.strided_load %arg21[%c3, %c0_176] {strides = array<i32: 8, 1>} : memref<32x32xf32, #tpu.memory_space<vmem>>, vector<2x32xf32>
    %c4 = arith.constant 4 : index
    %c0_177 = arith.constant 0 : index
    %172 = tpu.strided_load %arg21[%c4, %c0_177] {strides = array<i32: 8, 1>} : memref<32x32xf32, #tpu.memory_space<vmem>>, vector<2x32xf32>
    %c5 = arith.constant 5 : index
    %c0_178 = arith.constant 0 : index
    %173 = tpu.strided_load %arg21[%c5, %c0_178] {strides = array<i32: 8, 1>} : memref<32x32xf32, #tpu.memory_space<vmem>>, vector<2x32xf32>
    %c6 = arith.constant 6 : index
    %c0_179 = arith.constant 0 : index
    %174 = tpu.strided_load %arg21[%c6, %c0_179] {strides = array<i32: 8, 1>} : memref<32x32xf32, #tpu.memory_space<vmem>>, vector<2x32xf32>
    %c7 = arith.constant 7 : index
    %c0_180 = arith.constant 0 : index
    %175 = tpu.strided_load %arg21[%c7, %c0_180] {strides = array<i32: 8, 1>} : memref<32x32xf32, #tpu.memory_space<vmem>>, vector<2x32xf32>
    %176 = tpu.concatenate %168, %169, %170, %171, %172, %173, %174, %175 in 1 : vector<2x32xf32>, vector<2x32xf32>, vector<2x32xf32>, vector<2x32xf32>, vector<2x32xf32>, vector<2x32xf32>, vector<2x32xf32>, vector<2x32xf32> -> vector<2x256xf32>
    %177 = arith.truncf %176 : vector<2x256xf32> to vector<2x256xbf16>
    %c0_181 = arith.constant 0 : index
    %c0_182 = arith.constant 0 : index
    %178 = vector.load %arg15[%c0_181, %c0_182] : memref<256x5xbf16, #tpu.memory_space<vmem>>, vector<256x5xbf16>
    %cst_183 = arith.constant dense<0.000000e+00> : vector<2x5xf32>
    %179 = tpu.matmul %177, %178, %cst_183 {dimension_numbers = #tpu.dot_dimension_numbers<[1], [0], [0], [1], [0, 0, 1, 1], [], []>} : vector<2x256xbf16>, vector<256x5xbf16>, vector<2x5xf32> -> vector<2x5xf32>
    %c0_184 = arith.constant 0 : index
    %c0_185 = arith.constant 0 : index
    %180 = vector.load %arg16[%c0_184, %c0_185] : memref<1x5xf32, #tpu.memory_space<vmem>>, vector<1x5xf32>
    %181 = vector.broadcast %180 : vector<1x5xf32> to vector<2x5xf32>
    %182 = arith.addf %179, %181 : vector<2x5xf32>
    %c0_186 = arith.constant 0 : index
    %c0_187 = arith.constant 0 : index
    %183 = vector.load %arg17[%c0_186, %c0_187] : memref<2x5xf32, #tpu.memory_space<vmem>>, vector<2x5xf32>
    tpu.vector_store %arg17[%c0_186, %c0_187], %182 {strides = array<i32>} : memref<2x5xf32, #tpu.memory_space<vmem>>, vector<2x5xf32>,
    return
  }
  func.func @transform_0(%arg0: i32) -> (i32, i32) {
    %c0_i32 = arith.constant 0 : i32
    %c0_i32_0 = arith.constant 0 : i32
    return %arg0, %c0_i32 : i32, i32
  }
  func.func @transform_1(%arg0: i32) -> (i32, i32) {
    %c0_i32 = arith.constant 0 : i32
    %c0_i32_0 = arith.constant 0 : i32
    %c0_i32_1 = arith.constant 0 : i32
    return %c0_i32, %c0_i32_0 : i32, i32
  }
  func.func @transform_2(%arg0: i32) -> (i32, i32) {
    %c0_i32 = arith.constant 0 : i32
    %c0_i32_0 = arith.constant 0 : i32
    %c0_i32_1 = arith.constant 0 : i32
    return %c0_i32, %c0_i32_0 : i32, i32
  }
  func.func @transform_3(%arg0: i32) -> (i32, i32) {
    %c0_i32 = arith.constant 0 : i32
    %c0_i32_0 = arith.constant 0 : i32
    %c0_i32_1 = arith.constant 0 : i32
    return %c0_i32, %c0_i32_0 : i32, i32
  }
  func.func @transform_4(%arg0: i32) -> (i32, i32) {
    %c0_i32 = arith.constant 0 : i32
    %c0_i32_0 = arith.constant 0 : i32
    %c0_i32_1 = arith.constant 0 : i32
    return %c0_i32, %c0_i32_0 : i32, i32
  }
  func.func @transform_5(%arg0: i32) -> (i32, i32) {
    %c0_i32 = arith.constant 0 : i32
    %c0_i32_0 = arith.constant 0 : i32
    %c0_i32_1 = arith.constant 0 : i32
    return %c0_i32, %c0_i32_0 : i32, i32
  }
  func.func @transform_6(%arg0: i32) -> (i32, i32) {
    %c0_i32 = arith.constant 0 : i32
    %c0_i32_0 = arith.constant 0 : i32
    %c0_i32_1 = arith.constant 0 : i32
    return %c0_i32, %c0_i32_0 : i32, i32
  }
  func.func @transform_7(%arg0: i32) -> (i32, i32) {
    %c0_i32 = arith.constant 0 : i32
    %c0_i32_0 = arith.constant 0 : i32
    %c0_i32_1 = arith.constant 0 : i32
    return %c0_i32, %c0_i32_0 : i32, i32
  }
  func.func @transform_8(%arg0: i32) -> (i32, i32) {
    %c0_i32 = arith.constant 0 : i32
    %c0_i32_0 = arith.constant 0 : i32
    %c0_i32_1 = arith.constant 0 : i32
    return %c0_i32, %c0_i32_0 : i32, i32
  }
  func.func @transform_9(%arg0: i32) -> (i32, i32) {
    %c0_i32 = arith.constant 0 : i32
    %c0_i32_0 = arith.constant 0 : i32
    %c0_i32_1 = arith.constant 0 : i32
    return %c0_i32, %c0_i32_0 : i32, i32
  }
  func.func @transform_10(%arg0: i32) -> (i32, i32) {
    %c0_i32 = arith.constant 0 : i32
    %c0_i32_0 = arith.constant 0 : i32
    %c0_i32_1 = arith.constant 0 : i32
    return %c0_i32, %c0_i32_0 : i32, i32
  }
  func.func @transform_11(%arg0: i32) -> (i32, i32) {
    %c0_i32 = arith.constant 0 : i32
    %c0_i32_0 = arith.constant 0 : i32
    %c0_i32_1 = arith.constant 0 : i32
    return %c0_i32, %c0_i32_0 : i32, i32
  }
  func.func @transform_12(%arg0: i32) -> (i32, i32) {
    %c0_i32 = arith.constant 0 : i32
    %c0_i32_0 = arith.constant 0 : i32
    %c0_i32_1 = arith.constant 0 : i32
    return %c0_i32, %c0_i32_0 : i32, i32
  }
  func.func @transform_13(%arg0: i32) -> (i32, i32) {
    %c0_i32 = arith.constant 0 : i32
    %c0_i32_0 = arith.constant 0 : i32
    %c0_i32_1 = arith.constant 0 : i32
    return %c0_i32, %c0_i32_0 : i32, i32
  }
  func.func @transform_14(%arg0: i32) -> (i32, i32) {
    %c0_i32 = arith.constant 0 : i32
    %c0_i32_0 = arith.constant 0 : i32
    %c0_i32_1 = arith.constant 0 : i32
    return %c0_i32, %c0_i32_0 : i32, i32
  }
  func.func @transform_15(%arg0: i32) -> (i32, i32) {
    %c0_i32 = arith.constant 0 : i32
    %c0_i32_0 = arith.constant 0 : i32
    %c0_i32_1 = arith.constant 0 : i32
    return %c0_i32, %c0_i32_0 : i32, i32
  }
  func.func @transform_16(%arg0: i32) -> (i32, i32) {
    %c0_i32 = arith.constant 0 : i32
    %c0_i32_0 = arith.constant 0 : i32
    return %arg0, %c0_i32 : i32, i32
  }
}

</mosaic_0001>

<llo_original>
// kernel: deepecg_forward.1
$region0: #{deepecg_forward.1}
  #allocation0 [shape = 'u32[]', space=smem, size = 0x4, offset = 0x4, fixed_abs, tag = 'smem constant byte address 0x4 - core index']
  #allocation1 [shape = 'u32[144,128]{1,0:T(1,128)}', space=vmem, size = 0x12000, scoped, tag = 'internal scratch']
  #allocation2 [shape = 'f32[128,96]{1,0:T(8,128)}', space=vmem, size = 0x10000, scoped, tag = 'scratch operand']
  #allocation3 [shape = 'f32[128,32]{1,0:T(8,128)}', space=vmem, size = 0x10000, scoped, tag = 'scratch operand']
  #allocation4 [shape = 'f32[64,32]{1,0:T(8,128)}', space=vmem, size = 0x8000, scoped, tag = 'scratch operand']
  #allocation5 [shape = 'f32[32,32]{1,0:T(8,128)}', space=vmem, size = 0x4000, scoped, tag = 'scratch operand']
  %s0 = inlined_call_operand.vmem [shape: f32[256,4], index: 0, kind: input, shape index: {}]
  %s1 = inlined_call_operand.vmem [shape: bf16[12,32], index: 1, kind: input, shape index: {}]
  %s2 = inlined_call_operand.vmem [shape: f32[1,32], index: 2, kind: input, shape index: {}]
  %s3 = inlined_call_operand.vmem [shape: bf16[96,32], index: 3, kind: input, shape index: {}]
  %s4 = inlined_call_operand.vmem [shape: f32[1,32], index: 4, kind: input, shape index: {}]
  %s5 = inlined_call_operand.vmem [shape: bf16[96,32], index: 5, kind: input, shape index: {}]
  %s6 = inlined_call_operand.vmem [shape: f32[1,32], index: 6, kind: input, shape index: {}]
  %s7 = inlined_call_operand.vmem [shape: bf16[96,32], index: 7, kind: input, shape index: {}]
  %s8 = inlined_call_operand.vmem [shape: f32[1,32], index: 8, kind: input, shape index: {}]
  %s9 = inlined_call_operand.vmem [shape: bf16[96,32], index: 9, kind: input, shape index: {}]
  %s10 = inlined_call_operand.vmem [shape: f32[1,32], index: 10, kind: input, shape index: {}]
  %s11 = inlined_call_operand.vmem [shape: bf16[96,32], index: 11, kind: input, shape index: {}]
  %s12 = inlined_call_operand.vmem [shape: f32[1,32], index: 12, kind: input, shape index: {}]
  %s13 = inlined_call_operand.vmem [shape: bf16[32,32], index: 13, kind: input, shape index: {}]
  %s14 = inlined_call_operand.vmem [shape: bf16[256,5], index: 14, kind: input, shape index: {}]
  %s15 = inlined_call_operand.vmem [shape: f32[1,5], index: 15, kind: input, shape index: {}]
  %s16 = inlined_call_operand.hbm [shape: f32[2,5], index: 16, kind: output, shape index: {}]
  %s17 = sld [smem:[#allocation0]]
  $region74: #{deepecg_forward.1} parent=0
    _
  %s19 = ssub.s32 1, %s17
  %s20 = scalar_select 0, %s19, %s17
  $region1: #{deepecg_forward.1} parent=0
    #allocation6 [shape = 'u8[1024]{0}', space=vmem, size = 0x400, scoped, tag = 'output window, operand 0, single buffered']
    #allocation7 [shape = 's32[1]{0}', space=sflag, size = 0x4, scoped, tag = 'scoped memory for deepecg_forward.1']
    %21 = vsyncpa [#allocation7], 0
    // Predicated region
    $region2: #{deepecg_forward.1} parent=1 // pred_check
      _
    $region3: #{deepecg_forward.1} parent=1 // pred_check_branch
      %23 = sbr.rel (0) target = $region5
    $region4: #{deepecg_forward.1} parent=1 // pred_region
      _
    $region5: #{deepecg_forward.1} parent=1 // pred_fallthru
      _
    // Predicated region
    $region6: #{deepecg_forward.1} parent=1 // pred_check
      _
    $region7: #{deepecg_forward.1} parent=1 // pred_check_branch
      %25 = sbr.rel (0) target = $region9
    $region8: #{deepecg_forward.1} parent=1 // pred_region
      _
    $region9: #{deepecg_forward.1} parent=1 // pred_fallthru
      _
    // Predicated region
    $region10: #{deepecg_forward.1} parent=1 // pred_check
      _
    $region11: #{deepecg_forward.1} parent=1 // pred_check_branch
      %27 = sbr.rel (0) target = $region13
    $region12: #{deepecg_forward.1} parent=1 // pred_region
      _
    $region13: #{deepecg_forward.1} parent=1 // pred_fallthru
      _
    // Predicated region
    $region14: #{deepecg_forward.1} parent=1 // pred_check
      _
    $region15: #{deepecg_forward.1} parent=1 // pred_check_branch
      %29 = sbr.rel (0) target = $region17
    $region16: #{deepecg_forward.1} parent=1 // pred_region
      _
    $region17: #{deepecg_forward.1} parent=1 // pred_fallthru
      _
    // Predicated region
    $region18: #{deepecg_forward.1} parent=1 // pred_check
      _
    $region19: #{deepecg_forward.1} parent=1 // pred_check_branch
      %31 = sbr.rel (0) target = $region21
    $region20: #{deepecg_forward.1} parent=1 // pred_region
      _
    $region21: #{deepecg_forward.1} parent=1 // pred_fallthru
      _
    // Predicated region
    $region22: #{deepecg_forward.1} parent=1 // pred_check
      _
    $region23: #{deepecg_forward.1} parent=1 // pred_check_branch
      %33 = sbr.rel (0) target = $region25
    $region24: #{deepecg_forward.1} parent=1 // pred_region
      _
    $region25: #{deepecg_forward.1} parent=1 // pred_fallthru
      _
    // Predicated region
    $region26: #{deepecg_forward.1} parent=1 // pred_check
      _
    $region27: #{deepecg_forward.1} parent=1 // pred_check_branch
      %35 = sbr.rel (0) target = $region29
    $region28: #{deepecg_forward.1} parent=1 // pred_region
      _
    $region29: #{deepecg_forward.1} parent=1 // pred_fallthru
      _
    // Predicated region
    $region30: #{deepecg_forward.1} parent=1 // pred_check
      _
    $region31: #{deepecg_forward.1} parent=1 // pred_check_branch
      %37 = sbr.rel (0) target = $region33
    $region32: #{deepecg_forward.1} parent=1 // pred_region
      _
    $region33: #{deepecg_forward.1} parent=1 // pred_fallthru
      _
    // Predicated region
    $region34: #{deepecg_forward.1} parent=1 // pred_check
      _
    $region35: #{deepecg_forward.1} parent=1 // pred_check_branch
      %39 = sbr.rel (0) target = $region37
    $region36: #{deepecg_forward.1} parent=1 // pred_region
      _
    $region37: #{deepecg_forward.1} parent=1 // pred_fallthru
      _
    // Predicated region
    $region38: #{deepecg_forward.1} parent=1 // pred_check
      _
    $region39: #{deepecg_forward.1} parent=1 // pred_check_branch
      %41 = sbr.rel (0) target = $region41
    $region40: #{deepecg_forward.1} parent=1 // pred_region
      _
    $region41: #{deepecg_forward.1} parent=1 // pred_fallthru
      _
    // Predicated region
    $region42: #{deepecg_forward.1} parent=1 // pred_check
      _
    $region43: #{deepecg_forward.1} parent=1 // pred_check_branch
      %43 = sbr.rel (0) target = $region45
    $region44: #{deepecg_forward.1} parent=1 // pred_region
      _
    $region45: #{deepecg_forward.1} parent=1 // pred_fallthru
      _
    // Predicated region
    $region46: #{deepecg_forward.1} parent=1 // pred_check
      _
    $region47: #{deepecg_forward.1} parent=1 // pred_check_branch
      %45 = sbr.rel (0) target = $region49
    $region48: #{deepecg_forward.1} parent=1 // pred_region
      _
    $region49: #{deepecg_forward.1} parent=1 // pred_fallthru
      _
    // Predicated region
    $region50: #{deepecg_forward.1} parent=1 // pred_check
      _
    $region51: #{deepecg_forward.1} parent=1 // pred_check_branch
      %47 = sbr.rel (0) target = $region53
    $region52: #{deepecg_forward.1} parent=1 // pred_region
      _
    $region53: #{deepecg_forward.1} parent=1 // pred_fallthru
      _
    // Predicated region
    $region54: #{deepecg_forward.1} parent=1 // pred_check
      _
    $region55: #{deepecg_forward.1} parent=1 // pred_check_branch
      %49 = sbr.rel (0) target = $region57
    $region56: #{deepecg_forward.1} parent=1 // pred_region
      _
    $region57: #{deepecg_forward.1} parent=1 // pred_fallthru
      _
    // Predicated region
    $region58: #{deepecg_forward.1} parent=1 // pred_check
      _
    $region59: #{deepecg_forward.1} parent=1 // pred_check_branch
      %51 = sbr.rel (0) target = $region61
    $region60: #{deepecg_forward.1} parent=1 // pred_region
      _
    $region61: #{deepecg_forward.1} parent=1 // pred_fallthru
      _
    // Predicated region
    $region62: #{deepecg_forward.1} parent=1 // pred_check
      _
    $region63: #{deepecg_forward.1} parent=1 // pred_check_branch
      %53 = sbr.rel (0) target = $region65
    $region64: #{deepecg_forward.1} parent=1 // pred_region
      _
    $region65: #{deepecg_forward.1} parent=1 // pred_fallthru
      _
    %v55 = vld [vmem:[%s0] ss:$2 sm:$0xff]
    %s56 = scalar_lea.vmem %s0, 16
    %v57 = vld [vmem:[%s56] ss:$2 sm:$0xff]
    %s58 = scalar_lea.vmem %s0, 32
    %v59 = vld [vmem:[%s58] ss:$2 sm:$0xff]
    %s60 = scalar_lea.vmem %s0, 48
    %v61 = vld [vmem:[%s60] ss:$2 sm:$0xff]
    %s62 = scalar_lea.vmem %s0, 64
    %v63 = vld [vmem:[%s62] ss:$2 sm:$0xff]
    %s64 = scalar_lea.vmem %s0, 80
    %v65 = vld [vmem:[%s64] ss:$2 sm:$0xff]
    %s66 = scalar_lea.vmem %s0, 96
    %v67 = vld [vmem:[%s66] ss:$2 sm:$0xff]
    %s68 = scalar_lea.vmem %s0, 112
    %v69 = vld [vmem:[%s68] ss:$2 sm:$0x7f]
    %s70 = scalar_lea.vmem %s0, 1
    %v71 = vld [vmem:[%s70] ss:$2 sm:$0xff]
    %s72 = scalar_lea.vmem %s0, 17
    %v73 = vld [vmem:[%s72] ss:$2 sm:$0xff]
    %s74 = scalar_lea.vmem %s0, 33
    %v75 = vld [vmem:[%s74] ss:$2 sm:$0xff]
    %s76 = scalar_lea.vmem %s0, 49
    %v77 = vld [vmem:[%s76] ss:$2 sm:$0xff]
    %s78 = scalar_lea.vmem %s0, 65
    %v79 = vld [vmem:[%s78] ss:$2 sm:$0xff]
    %s80 = scalar_lea.vmem %s0, 81
    %v81 = vld [vmem:[%s80] ss:$2 sm:$0xff]
    %s82 = scalar_lea.vmem %s0, 97
    %v83 = vld [vmem:[%s82] ss:$2 sm:$0xff]
    %s84 = scalar_lea.vmem %s0, 113
    %v85 = vld [vmem:[%s84] ss:$2 sm:$0x7f]
    %s86 = scalar_lea.vmem %s0, 2
    %v87 = vld [vmem:[%s86] ss:$2 sm:$0xff]
    %s88 = scalar_lea.vmem %s0, 18
    %v89 = vld [vmem:[%s88] ss:$2 sm:$0xff]
    %s90 = scalar_lea.vmem %s0, 34
    %v91 = vld [vmem:[%s90] ss:$2 sm:$0xff]
    %s92 = scalar_lea.vmem %s0, 50
    %v93 = vld [vmem:[%s92] ss:$2 sm:$0xff]
    %s94 = scalar_lea.vmem %s0, 66
    %v95 = vld [vmem:[%s94] ss:$2 sm:$0xff]
    %s96 = scalar_lea.vmem %s0, 82
    %v97 = vld [vmem:[%s96] ss:$2 sm:$0xff]
    %s98 = scalar_lea.vmem %s0, 98
    %v99 = vld [vmem:[%s98] ss:$2 sm:$0xff]
    %s100 = scalar_lea.vmem %s0, 114
    %v101 = vld [vmem:[%s100] ss:$2 sm:$0x7f]
    %110 = vrot.lane.b32.xlu0 %v71, 4
    %v111 = vpop.permute.xlu0 %110
    %112 = vrot.lane.b32.xlu0 %v73, 4
    %v113 = vpop.permute.xlu0 %112
    %114 = vrot.lane.b32.xlu0 %v75, 4
    %v115 = vpop.permute.xlu0 %114
    %116 = vrot.lane.b32.xlu0 %v77, 4
    %v117 = vpop.permute.xlu0 %116
    %118 = vrot.lane.b32.xlu0 %v79, 4
    %v119 = vpop.permute.xlu0 %118
    %120 = vrot.lane.b32.xlu0 %v81, 4
    %v121 = vpop.permute.xlu0 %120
    %122 = vrot.lane.b32.xlu0 %v83, 4
    %v123 = vpop.permute.xlu0 %122
    %124 = vrot.lane.b32.xlu0 %v85, 4
    %v125 = vpop.permute.xlu0 %124
    %142 = vrot.lane.b32.xlu0 %v87, 8
    %v143 = vpop.permute.xlu0 %142
    %144 = vrot.lane.b32.xlu0 %v89, 8
    %v145 = vpop.permute.xlu0 %144
    %146 = vrot.lane.b32.xlu0 %v91, 8
    %v147 = vpop.permute.xlu0 %146
    %148 = vrot.lane.b32.xlu0 %v93, 8
    %v149 = vpop.permute.xlu0 %148
    %150 = vrot.lane.b32.xlu0 %v95, 8
    %v151 = vpop.permute.xlu0 %150
    %152 = vrot.lane.b32.xlu0 %v97, 8
    %v153 = vpop.permute.xlu0 %152
    %154 = vrot.lane.b32.xlu0 %v99, 8
    %v155 = vpop.permute.xlu0 %154
    %156 = vrot.lane.b32.xlu0 %v101, 8
    %v157 = vpop.permute.xlu0 %156
    %vm166 = vcmask 31744
    %v167 = vsel %vm166, %v55, %v111
    %v168 = vsel %vm166, %v57, %v113
    %v169 = vsel %vm166, %v59, %v115
    %v170 = vsel %vm166, %v61, %v117
    %v171 = vsel %vm166, %v63, %v119
    %v172 = vsel %vm166, %v65, %v121
    %v173 = vsel %vm166, %v67, %v123
    %v174 = vsel %vm166, %v69, %v125
    %vm175 = vcmask 64512
    %v176 = vsel %vm175, %v167, %v143
    %v177 = vsel %vm175, %v168, %v145
    %v178 = vsel %vm175, %v169, %v147
    %v179 = vsel %vm175, %v170, %v149
    %v180 = vsel %vm175, %v171, %v151
    %v181 = vsel %vm175, %v172, %v153
    %v182 = vsel %vm175, %v173, %v155
    %v183 = vsel %vm175, %v174, %v157
    %vm184 = vcmask 97280
    %185 = vst.msk [vmem:[#allocation2] sm:$0xff] %vm184, %v176
    %186 = vst.msk [vmem:[#allocation2 + $0x8] sm:$0xff] %vm184, %v177
    %187 = vst.msk [vmem:[#allocation2 + $0x10] sm:$0xff] %vm184, %v178
    %188 = vst.msk [vmem:[#allocation2 + $0x18] sm:$0xff] %vm184, %v179
    %189 = vst.msk [vmem:[#allocation2 + $0x20] sm:$0xff] %vm184, %v180
    %190 = vst.msk [vmem:[#allocation2 + $0x28] sm:$0xff] %vm184, %v181
    %191 = vst.msk [vmem:[#allocation2 + $0x30] sm:$0xff] %vm184, %v182
    %vm192 = vcmask 96256
    %193 = vst.msk [vmem:[#allocation2 + $0x38] sm:$0x7f] %vm192, %v183
    %s194 = scalar_lea.vmem %s0, 128
    %v195 = vld [vmem:[%s194] ss:$2 sm:$0xff]
    %s196 = scalar_lea.vmem %s0, 144
    %v197 = vld [vmem:[%s196] ss:$2 sm:$0xff]
    %s198 = scalar_lea.vmem %s0, 160
    %v199 = vld [vmem:[%s198] ss:$2 sm:$0xff]
    %s200 = scalar_lea.vmem %s0, 176
    %v201 = vld [vmem:[%s200] ss:$2 sm:$0xff]
    %s202 = scalar_lea.vmem %s0, 192
    %v203 = vld [vmem:[%s202] ss:$2 sm:$0xff]
    %s204 = scalar_lea.vmem %s0, 208
    %v205 = vld [vmem:[%s204] ss:$2 sm:$0xff]
    %s206 = scalar_lea.vmem %s0, 224
    %v207 = vld [vmem:[%s206] ss:$2 sm:$0xff]
    %s208 = scalar_lea.vmem %s0, 240
    %v209 = vld [vmem:[%s208] ss:$2 sm:$0x7f]
    %s210 = scalar_lea.vmem %s0, 129
    %v211 = vld [vmem:[%s210] ss:$2 sm:$0xff]
    %s212 = scalar_lea.vmem %s0, 145
    %v213 = vld [vmem:[%s212] ss:$2 sm:$0xff]
    %s214 = scalar_lea.vmem %s0, 161
    %v215 = vld [vmem:[%s214] ss:$2 sm:$0xff]
    %s216 = scalar_lea.vmem %s0, 177
    %v217 = vld [vmem:[%s216] ss:$2 sm:$0xff]
    %s218 = scalar_lea.vmem %s0, 193
    %v219 = vld [vmem:[%s218] ss:$2 sm:$0xff]
    %s220 = scalar_lea.vmem %s0, 209
    %v221 = vld [vmem:[%s220] ss:$2 sm:$0xff]
    %s222 = scalar_lea.vmem %s0, 225
    %v223 = vld [vmem:[%s222] ss:$2 sm:$0xff]
    %s224 = scalar_lea.vmem %s0, 241
    %v225 = vld [vmem:[%s224] ss:$2 sm:$0x7f]
    %s226 = scalar_lea.vmem %s0, 130
    %v227 = vld [vmem:[%s226] ss:$2 sm:$0xff]
    %s228 = scalar_lea.vmem %s0, 146
    %v229 = vld [vmem:[%s228] ss:$2 sm:$0xff]
    %s230 = scalar_lea.vmem %s0, 162
    %v231 = vld [vmem:[%s230] ss:$2 sm:$0xff]
    %s232 = scalar_lea.vmem %s0, 178
    %v233 = vld [vmem:[%s232] ss:$2 sm:$0xff]
    %s234 = scalar_lea.vmem %s0, 194
    %v235 = vld [vmem:[%s234] ss:$2 sm:$0xff]
    %s236 = scalar_lea.vmem %s0, 210
    %v237 = vld [vmem:[%s236] ss:$2 sm:$0xff]
    %s238 = scalar_lea.vmem %s0, 226
    %v239 = vld [vmem:[%s238] ss:$2 sm:$0xff]
    %s240 = scalar_lea.vmem %s0, 242
    %v241 = vld [vmem:[%s240] ss:$2 sm:$0x7f]
    %250 = vrot.lane.b32.xlu0 %v211, 4
    %v251 = vpop.permute.xlu0 %250
    %252 = vrot.lane.b32.xlu0 %v213, 4
    %v253 = vpop.permute.xlu0 %252
    %254 = vrot.lane.b32.xlu0 %v215, 4
    %v255 = vpop.permute.xlu0 %254
    %256 = vrot.lane.b32.xlu0 %v217, 4
    %v257 = vpop.permute.xlu0 %256
    %258 = vrot.lane.b32.xlu0 %v219, 4
    %v259 = vpop.permute.xlu0 %258
    %260 = vrot.lane.b32.xlu0 %v221, 4
    %v261 = vpop.permute.xlu0 %260
    %262 = vrot.lane.b32.xlu0 %v223, 4
    %v263 = vpop.permute.xlu0 %262
    %264 = vrot.lane.b32.xlu0 %v225, 4
    %v265 = vpop.permute.xlu0 %264
    %282 = vrot.lane.b32.xlu0 %v227, 8
    %v283 = vpop.permute.xlu0 %282
    %284 = vrot.lane.b32.xlu0 %v229, 8
    %v285 = vpop.permute.xlu0 %284
    %286 = vrot.lane.b32.xlu0 %v231, 8
    %v287 = vpop.permute.xlu0 %286
    %288 = vrot.lane.b32.xlu0 %v233, 8
    %v289 = vpop.permute.xlu0 %288
    %290 = vrot.lane.b32.xlu0 %v235, 8
    %v291 = vpop.permute.xlu0 %290
    %292 = vrot.lane.b32.xlu0 %v237, 8
    %v293 = vpop.permute.xlu0 %292
    %294 = vrot.lane.b32.xlu0 %v239, 8
    %v295 = vpop.permute.xlu0 %294
    %296 = vrot.lane.b32.xlu0 %v241, 8
    %v297 = vpop.permute.xlu0 %296
    %v306 = vsel %vm166, %v195, %v251
    %v307 = vsel %vm166, %v197, %v253
    %v308 = vsel %vm166, %v199, %v255
    %v309 = vsel %vm166, %v201, %v257
    %v310 = vsel %vm166, %v203, %v259
    %v311 = vsel %vm166, %v205, %v261
    %v312 = vsel %vm166, %v207, %v263
    %v313 = vsel %vm166, %v209, %v265
    %v314 = vsel %vm175, %v306, %v283
    %v315 = vsel %vm175, %v307, %v285
    %v316 = vsel %vm175, %v308, %v287
    %v317 = vsel %vm175, %v309, %v289
    %v318 = vsel %vm175, %v310, %v291
    %v319 = vsel %vm175, %v311, %v293
    %v320 = vsel %vm175, %v312, %v295
    %v321 = vsel %vm175, %v313, %v297
    %322 = vst.msk [vmem:[#allocation2 + $0x40] sm:$0xff] %vm184, %v314
    %323 = vst.msk [vmem:[#allocation2 + $0x48] sm:$0xff] %vm184, %v315
    %324 = vst.msk [vmem:[#allocation2 + $0x50] sm:$0xff] %vm184, %v316
    %325 = vst.msk [vmem:[#allocation2 + $0x58] sm:$0xff] %vm184, %v317
    %326 = vst.msk [vmem:[#allocation2 + $0x60] sm:$0xff] %vm184, %v318
    %327 = vst.msk [vmem:[#allocation2 + $0x68] sm:$0xff] %vm184, %v319
    %328 = vst.msk [vmem:[#allocation2 + $0x70] sm:$0xff] %vm184, %v320
    %329 = vst.msk [vmem:[#allocation2 + $0x78] sm:$0x7f] %vm192, %v321
    %v330 = vld [vmem:[#allocation2] sm:$0xff]
    %v331 = vld [vmem:[#allocation2 + $0x8] sm:$0xff]
    %v332 = vld [vmem:[#allocation2 + $0x10] sm:$0xff]
    %v333 = vld [vmem:[#allocation2 + $0x18] sm:$0xff]
    %v334 = vld [vmem:[#allocation2 + $0x20] sm:$0xff]
    %v335 = vld [vmem:[#allocation2 + $0x28] sm:$0xff]
    %v336 = vld [vmem:[#allocation2 + $0x30] sm:$0xff]
    %v337 = vld [vmem:[#allocation2 + $0x38] sm:$0xff]
    %v338 = vld [vmem:[#allocation2 + $0x40] sm:$0xff]
    %v339 = vld [vmem:[#allocation2 + $0x48] sm:$0xff]
    %v340 = vld [vmem:[#allocation2 + $0x50] sm:$0xff]
    %v341 = vld [vmem:[#allocation2 + $0x58] sm:$0xff]
    %v342 = vld [vmem:[#allocation2 + $0x60] sm:$0xff]
    %v343 = vld [vmem:[#allocation2 + $0x68] sm:$0xff]
    %v344 = vld [vmem:[#allocation2 + $0x70] sm:$0xff]
    %v345 = vld [vmem:[#allocation2 + $0x78] sm:$0xff]
    %v346 = vpack.c.bf16 %v331, %v330
    %v347 = vpack.c.bf16 %v333, %v332
    %v348 = vpack.c.bf16 %v335, %v334
    %v349 = vpack.c.bf16 %v337, %v336
    %v350 = vpack.c.bf16 %v339, %v338
    %v351 = vpack.c.bf16 %v341, %v340
    %v352 = vpack.c.bf16 %v343, %v342
    %v353 = vpack.c.bf16 %v345, %v344
    %v354 = vld [vmem:[%s1] sm:$0xf]
    %v355 = vld [vmem:[%s1 + $0x4] sm:$0x3]
    %v356 = vld [vmem:[%s2] sm:$0x1]
    %v358 = vlaneseq
    %v359 = vshrl.u32 %v358, 7
    %v360 = vsub.s32 0, %v359
    %v361 = vrot.slane %v356, %v360
    %v365 = vunpack.c.l.b16 %v354
    %v366 = vunpack.c.l.b16 %v355
    %v367 = vpack.c.b16 %v366, %v365
    %v369 = vsel %vm184, %v346, 0
    %v372 = vsel %vm184, %v347, 0
    %v375 = vsel %vm184, %v348, 0
    %v378 = vsel %vm184, %v349, 0
    %v381 = vsel %vm184, %v350, 0
    %v384 = vsel %vm184, %v351, 0
    %v387 = vsel %vm184, %v352, 0
    %v390 = vsel %vm184, %v353, 0
    %vm392 = vcmask 1045504
    %v394 = vsel %vm392, %v367, 0
    %396 = vmatprep.subr.bf16.mxu0 0
    %397 = vmatpush1.bf16.msra.mxu0 0
    %398 = vmatprep.subr.bf16.mxu0 0
    %399 = vmatpush1.bf16.msra.mxu0 0
    %400 = vmatprep.subr.bf16.mxu0 0
    %401 = vmatpush1.bf16.msra.mxu0 0
    %402 = vmatprep.subr.bf16.mxu0 0
    %403 = vmatpush1.bf16.msra.mxu0 0
    %404 = vmatprep.subr.bf16.mxu0 0
    %405 = vmatpush1.bf16.msra.mxu0 0
    %406 = vmatprep.subr.bf16.mxu0 0
    %407 = vmatpush1.bf16.msra.mxu0 0
    %408 = vmatprep.subr.bf16.mxu0 0
    %409 = vmatpush1.bf16.msra.mxu0 0
    %410 = vmatprep.subr.bf16.mxu0 0
    %411 = vmatpush1.bf16.msra.mxu0 %v394
    %412 = vmatprep.subr.bf16.mxu0 0
    %413 = vmatpush2.bf16.msra.mxu0 0
    %414 = vmatprep.subr.bf16.mxu0 0
    %415 = vmatpush2.bf16.msra.mxu0 0
    %416 = vmatprep.subr.bf16.mxu0 0
    %417 = vmatpush2.bf16.msra.mxu0 0
    %418 = vmatprep.subr.bf16.mxu0 0
    %419 = vmatpush2.bf16.msra.mxu0 0
    %420 = vmatprep.subr.bf16.mxu0 0
    %421 = vmatpush2.bf16.msra.mxu0 0
    %422 = vmatprep.subr.bf16.mxu0 0
    %423 = vmatpush2.bf16.msra.mxu0 0
    %424 = vmatprep.subr.bf16.mxu0 0
    %425 = vmatpush2.bf16.msra.mxu0 0
    %426 = vmatprep.subr.bf16.mxu0 0
    %427 = vmatpush2.bf16.msra.mxu0 0
    %428 = vmatprep.mubr.bf16.mxu0 0
    %429 = vmatmul.mubr.bf16.gmra.mxu0 %v369
    %v430 = vpop.f32.mrf.mxu0
    %v431 = vadd.f32 %v361, %v430
    %v432 = vpop.f32.mrf.mxu0
    %v433 = vpop.f32.mrf.mxu0
    %v434 = vadd.f32 %v361, %v433
    %v435 = vpop.f32.mrf.mxu0
    %436 = vmatprep.mubr.bf16.mxu0 0
    %437 = vmatmul.mubr.bf16.gmra.mxu0 %v372
    %v438 = vpop.f32.mrf.mxu0
    %v439 = vadd.f32 %v361, %v438
    %v440 = vpop.f32.mrf.mxu0
    %v441 = vpop.f32.mrf.mxu0
    %v442 = vadd.f32 %v361, %v441
    %v443 = vpop.f32.mrf.mxu0
    %444 = vmatprep.mubr.bf16.mxu0 0
    %445 = vmatmul.mubr.bf16.gmra.mxu0 %v375
    %v446 = vpop.f32.mrf.mxu0
    %v447 = vadd.f32 %v361, %v446
    %v448 = vpop.f32.mrf.mxu0
    %v449 = vpop.f32.mrf.mxu0
    %v450 = vadd.f32 %v361, %v449
    %v451 = vpop.f32.mrf.mxu0
    %452 = vmatprep.mubr.bf16.mxu0 0
    %453 = vmatmul.mubr.bf16.gmra.mxu0 %v378
    %v454 = vpop.f32.mrf.mxu0
    %v455 = vadd.f32 %v361, %v454
    %v456 = vpop.f32.mrf.mxu0
    %v457 = vpop.f32.mrf.mxu0
    %v458 = vadd.f32 %v361, %v457
    %v459 = vpop.f32.mrf.mxu0
    %460 = vmatprep.mubr.bf16.mxu0 0
    %461 = vmatmul.mubr.bf16.gmra.mxu0 %v381
    %v462 = vpop.f32.mrf.mxu0
    %v463 = vadd.f32 %v361, %v462
    %v464 = vpop.f32.mrf.mxu0
    %v465 = vpop.f32.mrf.mxu0
    %v466 = vadd.f32 %v361, %v465
    %v467 = vpop.f32.mrf.mxu0
    %468 = vmatprep.mubr.bf16.mxu0 0
    %469 = vmatmul.mubr.bf16.gmra.mxu0 %v384
    %v470 = vpop.f32.mrf.mxu0
    %v471 = vadd.f32 %v361, %v470
    %v472 = vpop.f32.mrf.mxu0
    %v473 = vpop.f32.mrf.mxu0
    %v474 = vadd.f32 %v361, %v473
    %v475 = vpop.f32.mrf.mxu0
    %476 = vmatprep.mubr.bf16.mxu0 0
    %477 = vmatmul.mubr.bf16.gmra.mxu0 %v387
    %v478 = vpop.f32.mrf.mxu0
    %v479 = vadd.f32 %v361, %v478
    %v480 = vpop.f32.mrf.mxu0
    %v481 = vpop.f32.mrf.mxu0
    %v482 = vadd.f32 %v361, %v481
    %v483 = vpop.f32.mrf.mxu0
    %484 = vmatprep.mubr.bf16.mxu0 0
    %485 = vmatmul.mubr.bf16.gmra.mxu0 %v390
    %v486 = vpop.f32.mrf.mxu0
    %v487 = vadd.f32 %v361, %v486
    %v488 = vpop.f32.mrf.mxu0
    %v489 = vpop.f32.mrf.mxu0
    %v490 = vadd.f32 %v361, %v489
    %v491 = vpop.f32.mrf.mxu0
    %492 = vdwg.mxu0
    %v493 = vmax.f32 %v431, 0.0
    %v494 = vmax.f32 %v434, 0.0
    %v495 = vmax.f32 %v439, 0.0
    %v496 = vmax.f32 %v442, 0.0
    %v497 = vmax.f32 %v447, 0.0
    %v498 = vmax.f32 %v450, 0.0
    %v499 = vmax.f32 %v455, 0.0
    %v500 = vmax.f32 %v458, 0.0
    %v501 = vmax.f32 %v463, 0.0
    %v502 = vmax.f32 %v466, 0.0
    %v503 = vmax.f32 %v471, 0.0
    %v504 = vmax.f32 %v474, 0.0
    %v505 = vmax.f32 %v479, 0.0
    %v506 = vmax.f32 %v482, 0.0
    %v507 = vmax.f32 %v487, 0.0
    %v508 = vmax.f32 %v490, 0.0
    %vm509 = vcmask 261120
    %510 = vst.msk [vmem:[#allocation3] sm:$0xff] %vm509, %v493
    %511 = vst.msk [vmem:[#allocation3 + $0x8] sm:$0xff] %vm509, %v494
    %512 = vst.msk [vmem:[#allocation3 + $0x10] sm:$0xff] %vm509, %v495
    %513 = vst.msk [vmem:[#allocation3 + $0x18] sm:$0xff] %vm509, %v496
    %514 = vst.msk [vmem:[#allocation3 + $0x20] sm:$0xff] %vm509, %v497
    %515 = vst.msk [vmem:[#allocation3 + $0x28] sm:$0xff] %vm509, %v498
    %516 = vst.msk [vmem:[#allocation3 + $0x30] sm:$0xff] %vm509, %v499
    %517 = vst.msk [vmem:[#allocation3 + $0x38] sm:$0xff] %vm509, %v500
    %518 = vst.msk [vmem:[#allocation3 + $0x40] sm:$0xff] %vm509, %v501
    %519 = vst.msk [vmem:[#allocation3 + $0x48] sm:$0xff] %vm509, %v502
    %520 = vst.msk [vmem:[#allocation3 + $0x50] sm:$0xff] %vm509, %v503
    %521 = vst.msk [vmem:[#allocation3 + $0x58] sm:$0xff] %vm509, %v504
    %522 = vst.msk [vmem:[#allocation3 + $0x60] sm:$0xff] %vm509, %v505
    %523 = vst.msk [vmem:[#allocation3 + $0x68] sm:$0xff] %vm509, %v506
    %524 = vst.msk [vmem:[#allocation3 + $0x70] sm:$0xff] %vm509, %v507
    %525 = vst.msk [vmem:[#allocation3 + $0x78] sm:$0xff] %vm509, %v508
    %v526 = vld [vmem:[#allocation3] ss:$2 sm:$0xff]
    %s527 = scalar_lea.vmem [#allocation3], 16
    %v528 = vld [vmem:[%s527] ss:$2 sm:$0xff]
    %s529 = scalar_lea.vmem [#allocation3], 32
    %v530 = vld [vmem:[%s529] ss:$2 sm:$0xff]
    %s531 = scalar_lea.vmem [#allocation3], 48
    %v532 = vld [vmem:[%s531] ss:$2 sm:$0x7f]
    %s533 = scalar_lea.vmem [#allocation3], 1
    %v534 = vld [vmem:[%s533] ss:$2 sm:$0xff]
    %s535 = scalar_lea.vmem [#allocation3], 17
    %v536 = vld [vmem:[%s535] ss:$2 sm:$0xff]
    %s537 = scalar_lea.vmem [#allocation3], 33
    %v538 = vld [vmem:[%s537] ss:$2 sm:$0xff]
    %s539 = scalar_lea.vmem [#allocation3], 49
    %v540 = vld [vmem:[%s539] ss:$2 sm:$0x7f]
    %s541 = scalar_lea.vmem [#allocation3], 2
    %v542 = vld [vmem:[%s541] ss:$2 sm:$0xff]
    %s543 = scalar_lea.vmem [#allocation3], 18
    %v544 = vld [vmem:[%s543] ss:$2 sm:$0xff]
    %s545 = scalar_lea.vmem [#allocation3], 34
    %v546 = vld [vmem:[%s545] ss:$2 sm:$0xff]
    %s547 = scalar_lea.vmem [#allocation3], 50
    %v548 = vld [vmem:[%s547] ss:$2 sm:$0x7f]
    %553 = vrot.lane.b32.xlu0 %v534, 32
    %v554 = vpop.permute.xlu0 %553
    %555 = vrot.lane.b32.xlu0 %v536, 32
    %v556 = vpop.permute.xlu0 %555
    %557 = vrot.lane.b32.xlu0 %v538, 32
    %v558 = vpop.permute.xlu0 %557
    %559 = vrot.lane.b32.xlu0 %v540, 32
    %v560 = vpop.permute.xlu0 %559
    %569 = vrot.lane.b32.xlu0 %v542, 64
    %v570 = vpop.permute.xlu0 %569
    %571 = vrot.lane.b32.xlu0 %v544, 64
    %v572 = vpop.permute.xlu0 %571
    %573 = vrot.lane.b32.xlu0 %v546, 64
    %v574 = vpop.permute.xlu0 %573
    %575 = vrot.lane.b32.xlu0 %v548, 64
    %v576 = vpop.permute.xlu0 %575
    %v581 = vsel %vm509, %v526, %v554
    %v582 = vsel %vm509, %v528, %v556
    %v583 = vsel %vm509, %v530, %v558
    %v584 = vsel %vm509, %v532, %v560
    %vm585 = vcmask 523264
    %v586 = vsel %vm585, %v581, %v570
    %v587 = vsel %vm585, %v582, %v572
    %v588 = vsel %vm585, %v583, %v574
    %v589 = vsel %vm585, %v584, %v576
    %vm590 = vcmask 785408
    %591 = vst.msk [vmem:[#allocation2] sm:$0xff] %vm590, %v586
    %592 = vst.msk [vmem:[#allocation2 + $0x8] sm:$0xff] %vm590, %v587
    %593 = vst.msk [vmem:[#allocation2 + $0x10] sm:$0xff] %vm590, %v588
    %vm594 = vcmask 784384
    %595 = vst.msk [vmem:[#allocation2 + $0x18] sm:$0x7f] %vm594, %v589
    %s596 = scalar_lea.vmem [#allocation3], 64
    %v597 = vld [vmem:[%s596] ss:$2 sm:$0xff]
    %s598 = scalar_lea.vmem [#allocation3], 80
    %v599 = vld [vmem:[%s598] ss:$2 sm:$0xff]
    %s600 = scalar_lea.vmem [#allocation3], 96
    %v601 = vld [vmem:[%s600] ss:$2 sm:$0xff]
    %s602 = scalar_lea.vmem [#allocation3], 112
    %v603 = vld [vmem:[%s602] ss:$2 sm:$0x7f]
    %s604 = scalar_lea.vmem [#allocation3], 65
    %v605 = vld [vmem:[%s604] ss:$2 sm:$0xff]
    %s606 = scalar_lea.vmem [#allocation3], 81
    %v607 = vld [vmem:[%s606] ss:$2 sm:$0xff]
    %s608 = scalar_lea.vmem [#allocation3], 97
    %v609 = vld [vmem:[%s608] ss:$2 sm:$0xff]
    %s610 = scalar_lea.vmem [#allocation3], 113
    %v611 = vld [vmem:[%s610] ss:$2 sm:$0x7f]
    %s612 = scalar_lea.vmem [#allocation3], 66
    %v613 = vld [vmem:[%s612] ss:$2 sm:$0xff]
    %s614 = scalar_lea.vmem [#allocation3], 82
    %v615 = vld [vmem:[%s614] ss:$2 sm:$0xff]
    %s616 = scalar_lea.vmem [#allocation3], 98
    %v617 = vld [vmem:[%s616] ss:$2 sm:$0xff]
    %s618 = scalar_lea.vmem [#allocation3], 114
    %v619 = vld [vmem:[%s618] ss:$2 sm:$0x7f]
    %624 = vrot.lane.b32.xlu0 %v605, 32
    %v625 = vpop.permute.xlu0 %624
    %626 = vrot.lane.b32.xlu0 %v607, 32
    %v627 = vpop.permute.xlu0 %626
    %628 = vrot.lane.b32.xlu0 %v609, 32
    %v629 = vpop.permute.xlu0 %628
    %630 = vrot.lane.b32.xlu0 %v611, 32
    %v631 = vpop.permute.xlu0 %630
    %640 = vrot.lane.b32.xlu0 %v613, 64
    %v641 = vpop.permute.xlu0 %640
    %642 = vrot.lane.b32.xlu0 %v615, 64
    %v643 = vpop.permute.xlu0 %642
    %644 = vrot.lane.b32.xlu0 %v617, 64
    %v645 = vpop.permute.xlu0 %644
    %646 = vrot.lane.b32.xlu0 %v619, 64
    %v647 = vpop.permute.xlu0 %646
    %v652 = vsel %vm509, %v597, %v625
    %v653 = vsel %vm509, %v599, %v627
    %v654 = vsel %vm509, %v601, %v629
    %v655 = vsel %vm509, %v603, %v631
    %v656 = vsel %vm585, %v652, %v641
    %v657 = vsel %vm585, %v653, %v643
    %v658 = vsel %vm585, %v654, %v645
    %v659 = vsel %vm585, %v655, %v647
    %660 = vst.msk [vmem:[#allocation2 + $0x20] sm:$0xff] %vm590, %v656
    %661 = vst.msk [vmem:[#allocation2 + $0x28] sm:$0xff] %vm590, %v657
    %662 = vst.msk [vmem:[#allocation2 + $0x30] sm:$0xff] %vm590, %v658
    %663 = vst.msk [vmem:[#allocation2 + $0x38] sm:$0x7f] %vm594, %v659
    %v664 = vld [vmem:[#allocation2] sm:$0xff]
    %v665 = vld [vmem:[#allocation2 + $0x8] sm:$0xff]
    %v666 = vld [vmem:[#allocation2 + $0x10] sm:$0xff]
    %v667 = vld [vmem:[#allocation2 + $0x18] sm:$0xff]
    %v668 = vld [vmem:[#allocation2 + $0x20] sm:$0xff]
    %v669 = vld [vmem:[#allocation2 + $0x28] sm:$0xff]
    %v670 = vld [vmem:[#allocation2 + $0x30] sm:$0xff]
    %v671 = vld [vmem:[#allocation2 + $0x38] sm:$0xff]
    %v672 = vpack.c.bf16 %v665, %v664
    %v673 = vpack.c.bf16 %v667, %v666
    %v674 = vpack.c.bf16 %v669, %v668
    %v675 = vpack.c.bf16 %v671, %v670
    %v676 = vld [vmem:[%s3] sm:$0xf]
    %v677 = vld [vmem:[%s3 + $0x4] sm:$0xf]
    %v678 = vld [vmem:[%s3 + $0x8] sm:$0xf]
    %v679 = vld [vmem:[%s3 + $0xc] sm:$0xf]
    %v680 = vld [vmem:[%s3 + $0x10] sm:$0xf]
    %v681 = vld [vmem:[%s3 + $0x14] sm:$0xf]
    %v682 = vld [vmem:[%s3 + $0x18] sm:$0xf]
    %v683 = vld [vmem:[%s3 + $0x1c] sm:$0xf]
    %v684 = vld [vmem:[%s3 + $0x20] sm:$0xf]
    %v685 = vld [vmem:[%s3 + $0x24] sm:$0xf]
    %v686 = vld [vmem:[%s3 + $0x28] sm:$0xf]
    %v687 = vld [vmem:[%s3 + $0x2c] sm:$0xf]
    %v688 = vld [vmem:[%s4] sm:$0x1]
    %v690 = vlaneseq
    %v691 = vshrl.u32 %v690, 7
    %v692 = vsub.s32 0, %v691
    %v693 = vrot.slane %v688, %v692
    %v707 = vunpack.c.l.b16 %v676
    %v708 = vunpack.c.l.b16 %v677
    %v709 = vunpack.c.l.b16 %v678
    %v710 = vunpack.c.l.b16 %v679
    %v711 = vunpack.c.l.b16 %v680
    %v712 = vunpack.c.l.b16 %v681
    %v713 = vunpack.c.l.b16 %v682
    %v714 = vunpack.c.l.b16 %v683
    %v715 = vunpack.c.l.b16 %v684
    %v716 = vunpack.c.l.b16 %v685
    %v717 = vunpack.c.l.b16 %v686
    %v718 = vunpack.c.l.b16 %v687
    %v719 = vpack.c.b16 %v708, %v707
    %v720 = vpack.c.b16 %v710, %v709
    %v721 = vpack.c.b16 %v712, %v711
    %v722 = vpack.c.b16 %v714, %v713
    %v723 = vpack.c.b16 %v716, %v715
    %v724 = vpack.c.b16 %v718, %v717
    %v732 = vsel %vm590, %v672, 0
    %v735 = vsel %vm590, %v673, 0
    %v738 = vsel %vm590, %v674, 0
    %v741 = vsel %vm590, %v675, 0
    %743 = vmatprep.subr.bf16.mxu0 0
    %744 = vmatpush1.bf16.msra.mxu0 0
    %745 = vmatprep.subr.bf16.mxu0 0
    %746 = vmatpush1.bf16.msra.mxu0 0
    %747 = vmatprep.subr.bf16.mxu0 0
    %748 = vmatpush1.bf16.msra.mxu0 %v724
    %749 = vmatprep.subr.bf16.mxu0 0
    %750 = vmatpush1.bf16.msra.mxu0 %v723
    %751 = vmatprep.subr.bf16.mxu0 0
    %752 = vmatpush1.bf16.msra.mxu0 %v722
    %753 = vmatprep.subr.bf16.mxu0 0
    %754 = vmatpush1.bf16.msra.mxu0 %v721
    %755 = vmatprep.subr.bf16.mxu0 0
    %756 = vmatpush1.bf16.msra.mxu0 %v720
    %757 = vmatprep.subr.bf16.mxu0 0
    %758 = vmatpush1.bf16.msra.mxu0 %v719
    %759 = vmatprep.subr.bf16.mxu0 0
    %760 = vmatpush2.bf16.msra.mxu0 0
    %761 = vmatprep.subr.bf16.mxu0 0
    %762 = vmatpush2.bf16.msra.mxu0 0
    %763 = vmatprep.subr.bf16.mxu0 0
    %764 = vmatpush2.bf16.msra.mxu0 0
    %765 = vmatprep.subr.bf16.mxu0 0
    %766 = vmatpush2.bf16.msra.mxu0 0
    %767 = vmatprep.subr.bf16.mxu0 0
    %768 = vmatpush2.bf16.msra.mxu0 0
    %769 = vmatprep.subr.bf16.mxu0 0
    %770 = vmatpush2.bf16.msra.mxu0 0
    %771 = vmatprep.subr.bf16.mxu0 0
    %772 = vmatpush2.bf16.msra.mxu0 0
    %773 = vmatprep.subr.bf16.mxu0 0
    %774 = vmatpush2.bf16.msra.mxu0 0
    %775 = vmatprep.mubr.bf16.mxu0 0
    %776 = vmatmul.mubr.bf16.gmra.mxu0 %v732
    %v777 = vpop.f32.mrf.mxu0
    %v778 = vadd.f32 %v693, %v777
    %v779 = vpop.f32.mrf.mxu0
    %v780 = vpop.f32.mrf.mxu0
    %v781 = vadd.f32 %v693, %v780
    %v782 = vpop.f32.mrf.mxu0
    %783 = vmatprep.mubr.bf16.mxu0 0
    %784 = vmatmul.mubr.bf16.gmra.mxu0 %v735
    %v785 = vpop.f32.mrf.mxu0
    %v786 = vadd.f32 %v693, %v785
    %v787 = vpop.f32.mrf.mxu0
    %v788 = vpop.f32.mrf.mxu0
    %v789 = vadd.f32 %v693, %v788
    %v790 = vpop.f32.mrf.mxu0
    %791 = vmatprep.mubr.bf16.mxu0 0
    %792 = vmatmul.mubr.bf16.gmra.mxu0 %v738
    %v793 = vpop.f32.mrf.mxu0
    %v794 = vadd.f32 %v693, %v793
    %v795 = vpop.f32.mrf.mxu0
    %v796 = vpop.f32.mrf.mxu0
    %v797 = vadd.f32 %v693, %v796
    %v798 = vpop.f32.mrf.mxu0
    %799 = vmatprep.mubr.bf16.mxu0 0
    %800 = vmatmul.mubr.bf16.gmra.mxu0 %v741
    %v801 = vpop.f32.mrf.mxu0
    %v802 = vadd.f32 %v693, %v801
    %v803 = vpop.f32.mrf.mxu0
    %v804 = vpop.f32.mrf.mxu0
    %v805 = vadd.f32 %v693, %v804
    %v806 = vpop.f32.mrf.mxu0
    %807 = vdwg.mxu0
    %v808 = vmax.f32 %v778, 0.0
    %v809 = vmax.f32 %v781, 0.0
    %v810 = vmax.f32 %v786, 0.0
    %v811 = vmax.f32 %v789, 0.0
    %v812 = vmax.f32 %v794, 0.0
    %v813 = vmax.f32 %v797, 0.0
    %v814 = vmax.f32 %v802, 0.0
    %v815 = vmax.f32 %v805, 0.0
    %v816 = vmul.f32 %v808, %v808
    %v817 = vmul.f32 %v809, %v809
    %v818 = vmul.f32 %v810, %v810
    %v819 = vmul.f32 %v811, %v811
    %v820 = vmul.f32 %v812, %v812
    %v821 = vmul.f32 %v813, %v813
    %v822 = vmul.f32 %v814, %v814
    %v823 = vmul.f32 %v815, %v815
    %v824 = vpack.c.bf16 %v817, %v816
    %v825 = vpack.c.bf16 %v819, %v818
    %v826 = vpack.c.bf16 %v821, %v820
    %v827 = vpack.c.bf16 %v823, %v822
    %v828 = vld [vmem:[%s13] sm:$0xf]
    %v829 = vld [vmem:[%s13 + $0x4] sm:$0xf]
    %v830 = vld [vmem:[%s13 + $0x8] sm:$0xf]
    %v831 = vld [vmem:[%s13 + $0xc] sm:$0xf]
    %v836 = vunpack.c.l.b16 %v828
    %v837 = vunpack.c.l.b16 %v829
    %v838 = vunpack.c.l.b16 %v830
    %v839 = vunpack.c.l.b16 %v831
    %v840 = vpack.c.b16 %v837, %v836
    %v841 = vpack.c.b16 %v839, %v838
    %v845 = vsel %vm509, %v824, 0
    %v848 = vsel %vm509, %v825, 0
    %v851 = vsel %vm509, %v826, 0
    %v854 = vsel %vm509, %v827, 0
    %856 = vmatprep.subr.bf16.mxu0 0
    %857 = vmatpush1.bf16.msra.mxu0 0
    %858 = vmatprep.subr.bf16.mxu0 0
    %859 = vmatpush1.bf16.msra.mxu0 0
    %860 = vmatprep.subr.bf16.mxu0 0
    %861 = vmatpush1.bf16.msra.mxu0 0
    %862 = vmatprep.subr.bf16.mxu0 0
    %863 = vmatpush1.bf16.msra.mxu0 0
    %864 = vmatprep.subr.bf16.mxu0 0
    %865 = vmatpush1.bf16.msra.mxu0 0
    %866 = vmatprep.subr.bf16.mxu0 0
    %867 = vmatpush1.bf16.msra.mxu0 0
    %868 = vmatprep.subr.bf16.mxu0 0
    %869 = vmatpush1.bf16.msra.mxu0 %v841
    %870 = vmatprep.subr.bf16.mxu0 0
    %871 = vmatpush1.bf16.msra.mxu0 %v840
    %872 = vmatprep.subr.bf16.mxu0 0
    %873 = vmatpush2.bf16.msra.mxu0 0
    %874 = vmatprep.subr.bf16.mxu0 0
    %875 = vmatpush2.bf16.msra.mxu0 0
    %876 = vmatprep.subr.bf16.mxu0 0
    %877 = vmatpush2.bf16.msra.mxu0 0
    %878 = vmatprep.subr.bf16.mxu0 0
    %879 = vmatpush2.bf16.msra.mxu0 0
    %880 = vmatprep.subr.bf16.mxu0 0
    %881 = vmatpush2.bf16.msra.mxu0 0
    %882 = vmatprep.subr.bf16.mxu0 0
    %883 = vmatpush2.bf16.msra.mxu0 0
    %884 = vmatprep.subr.bf16.mxu0 0
    %885 = vmatpush2.bf16.msra.mxu0 0
    %886 = vmatprep.subr.bf16.mxu0 0
    %887 = vmatpush2.bf16.msra.mxu0 0
    %888 = vmatprep.mubr.bf16.mxu0 0
    %889 = vmatmul.mubr.bf16.gmra.mxu0 %v845
    %v890 = vpop.f32.mrf.mxu0
    %v891 = vadd.f32 0.0, %v890
    %v892 = vpop.f32.mrf.mxu0
    %v893 = vpop.f32.mrf.mxu0
    %v894 = vadd.f32 0.0, %v893
    %v895 = vpop.f32.mrf.mxu0
    %896 = vmatprep.mubr.bf16.mxu0 0
    %897 = vmatmul.mubr.bf16.gmra.mxu0 %v848
    %v898 = vpop.f32.mrf.mxu0
    %v899 = vadd.f32 0.0, %v898
    %v900 = vpop.f32.mrf.mxu0
    %v901 = vpop.f32.mrf.mxu0
    %v902 = vadd.f32 0.0, %v901
    %v903 = vpop.f32.mrf.mxu0
    %904 = vmatprep.mubr.bf16.mxu0 0
    %905 = vmatmul.mubr.bf16.gmra.mxu0 %v851
    %v906 = vpop.f32.mrf.mxu0
    %v907 = vadd.f32 0.0, %v906
    %v908 = vpop.f32.mrf.mxu0
    %v909 = vpop.f32.mrf.mxu0
    %v910 = vadd.f32 0.0, %v909
    %v911 = vpop.f32.mrf.mxu0
    %912 = vmatprep.mubr.bf16.mxu0 0
    %913 = vmatmul.mubr.bf16.gmra.mxu0 %v854
    %v914 = vpop.f32.mrf.mxu0
    %v915 = vadd.f32 0.0, %v914
    %v916 = vpop.f32.mrf.mxu0
    %v917 = vpop.f32.mrf.mxu0
    %v918 = vadd.f32 0.0, %v917
    %v919 = vpop.f32.mrf.mxu0
    %920 = vdwg.mxu0
    %v921 = vmul.f32 %v891, 4e-05
    %v922 = vmul.f32 %v894, 4e-05
    %v923 = vmul.f32 %v899, 4e-05
    %v924 = vmul.f32 %v902, 4e-05
    %v925 = vmul.f32 %v907, 4e-05
    %v926 = vmul.f32 %v910, 4e-05
    %v927 = vmul.f32 %v915, 4e-05
    %v928 = vmul.f32 %v918, 4e-05
    %v929 = vadd.f32 %v921, 1.0
    %v930 = vadd.f32 %v922, 1.0
    %v931 = vadd.f32 %v923, 1.0
    %v932 = vadd.f32 %v924, 1.0
    %v933 = vadd.f32 %v925, 1.0
    %v934 = vadd.f32 %v926, 1.0
    %v935 = vadd.f32 %v927, 1.0
    %v936 = vadd.f32 %v928, 1.0
    %v937 = vrsqrt.pop %v929
    %v938 = vrsqrt.pop %v930
    %v939 = vrsqrt.pop %v931
    %v940 = vrsqrt.pop %v932
    %v941 = vrsqrt.pop %v933
    %v942 = vrsqrt.pop %v934
    %v943 = vrsqrt.pop %v935
    %v944 = vrsqrt.pop %v936
    %v945 = vrsqrt.pop %v937
    %v946 = vmul.f32 %v937, %v945
    %vm947 = vcmp.eq.f32.partialorder %v937, inf
    %v948 = vsel %vm947, %v937, %v946
    %vm949 = vcmp.eq.f32.partialorder %v937, 0.0
    %v950 = vand.u32 %v937, 2147483648
    %v951 = vsel %vm949, %v950, %v948
    %v952 = vrsqrt.pop %v938
    %v953 = vmul.f32 %v938, %v952
    %vm954 = vcmp.eq.f32.partialorder %v938, inf
    %v955 = vsel %vm954, %v938, %v953
    %vm956 = vcmp.eq.f32.partialorder %v938, 0.0
    %v957 = vand.u32 %v938, 2147483648
    %v958 = vsel %vm956, %v957, %v955
    %v959 = vrsqrt.pop %v939
    %v960 = vmul.f32 %v939, %v959
    %vm961 = vcmp.eq.f32.partialorder %v939, inf
    %v962 = vsel %vm961, %v939, %v960
    %vm963 = vcmp.eq.f32.partialorder %v939, 0.0
    %v964 = vand.u32 %v939, 2147483648
    %v965 = vsel %vm963, %v964, %v962
    %v966 = vrsqrt.pop %v940
    %v967 = vmul.f32 %v940, %v966
    %vm968 = vcmp.eq.f32.partialorder %v940, inf
    %v969 = vsel %vm968, %v940, %v967
    %vm970 = vcmp.eq.f32.partialorder %v940, 0.0
    %v971 = vand.u32 %v940, 2147483648
    %v972 = vsel %vm970, %v971, %v969
    %v973 = vrsqrt.pop %v941
    %v974 = vmul.f32 %v941, %v973
    %vm975 = vcmp.eq.f32.partialorder %v941, inf
    %v976 = vsel %vm975, %v941, %v974
    %vm977 = vcmp.eq.f32.partialorder %v941, 0.0
    %v978 = vand.u32 %v941, 2147483648
    %v979 = vsel %vm977, %v978, %v976
    %v980 = vrsqrt.pop %v942
    %v981 = vmul.f32 %v942, %v980
    %vm982 = vcmp.eq.f32.partialorder %v942, inf
    %v983 = vsel %vm982, %v942, %v981
    %vm984 = vcmp.eq.f32.partialorder %v942, 0.0
    %v985 = vand.u32 %v942, 2147483648
    %v986 = vsel %vm984, %v985, %v983
    %v987 = vrsqrt.pop %v943
    %v988 = vmul.f32 %v943, %v987
    %vm989 = vcmp.eq.f32.partialorder %v943, inf
    %v990 = vsel %vm989, %v943, %v988
    %vm991 = vcmp.eq.f32.partialorder %v943, 0.0
    %v992 = vand.u32 %v943, 2147483648
    %v993 = vsel %vm991, %v992, %v990
    %v994 = vrsqrt.pop %v944
    %v995 = vmul.f32 %v944, %v994
    %vm996 = vcmp.eq.f32.partialorder %v944, inf
    %v997 = vsel %vm996, %v944, %v995
    %vm998 = vcmp.eq.f32.partialorder %v944, 0.0
    %v999 = vand.u32 %v944, 2147483648
    %v1000 = vsel %vm998, %v999, %v997
    %v1001 = vmul.f32 %v937, %v951
    %v1002 = vmul.f32 %v938, %v958
    %v1003 = vmul.f32 %v939, %v965
    %v1004 = vmul.f32 %v940, %v972
    %v1005 = vmul.f32 %v941, %v979
    %v1006 = vmul.f32 %v942, %v986
    %v1007 = vmul.f32 %v943, %v993
    %v1008 = vmul.f32 %v944, %v1000
    %v1009 = vmul.f32 %v808, %v1001
    %v1010 = vmul.f32 %v809, %v1002
    %v1011 = vmul.f32 %v810, %v1003
    %v1012 = vmul.f32 %v811, %v1004
    %v1013 = vmul.f32 %v812, %v1005
    %v1014 = vmul.f32 %v813, %v1006
    %v1015 = vmul.f32 %v814, %v1007
    %v1016 = vmul.f32 %v815, %v1008
    %1017 = vst.msk [vmem:[#allocation4] sm:$0xff] %vm509, %v1009
    %1018 = vst.msk [vmem:[#allocation4 + $0x8] sm:$0xff] %vm509, %v1010
    %1019 = vst.msk [vmem:[#allocation4 + $0x10] sm:$0xff] %vm509, %v1011
    %1020 = vst.msk [vmem:[#allocation4 + $0x18] sm:$0xff] %vm509, %v1012
    %1021 = vst.msk [vmem:[#allocation4 + $0x20] sm:$0xff] %vm509, %v1013
    %1022 = vst.msk [vmem:[#allocation4 + $0x28] sm:$0xff] %vm509, %v1014
    %1023 = vst.msk [vmem:[#allocation4 + $0x30] sm:$0xff] %vm509, %v1015
    %1024 = vst.msk [vmem:[#allocation4 + $0x38] sm:$0xff] %vm509, %v1016
    %v1025 = vld [vmem:[#allocation4] sm:$0xff]
    %v1026 = vld [vmem:[#allocation4 + $0x8] sm:$0xff]
    %v1027 = vld [vmem:[#allocation4 + $0x10] sm:$0xff]
    %v1028 = vld [vmem:[#allocation4 + $0x18] sm:$0x1f]
    %v1029 = vld [vmem:[#allocation4 + $0x1] sm:$0xff]
    %v1030 = vld [vmem:[#allocation4 + $0x9] sm:$0xff]
    %v1031 = vld [vmem:[#allocation4 + $0x11] sm:$0xff]
    %v1032 = vld [vmem:[#allocation4 + $0x19] sm:$0x1f]
    %v1033 = vld [vmem:[#allocation4 + $0x2] sm:$0xff]
    %v1034 = vld [vmem:[#allocation4 + $0xa] sm:$0xff]
    %v1035 = vld [vmem:[#allocation4 + $0x12] sm:$0xff]
    %v1036 = vld [vmem:[#allocation4 + $0x1a] sm:$0x1f]
    %1041 = vrot.lane.b32.xlu0 %v1029, 32
    %v1042 = vpop.permute.xlu0 %1041
    %1043 = vrot.lane.b32.xlu0 %v1030, 32
    %v1044 = vpop.permute.xlu0 %1043
    %1045 = vrot.lane.b32.xlu0 %v1031, 32
    %v1046 = vpop.permute.xlu0 %1045
    %1047 = vrot.lane.b32.xlu0 %v1032, 32
    %v1048 = vpop.permute.xlu0 %1047
    %1057 = vrot.lane.b32.xlu0 %v1033, 64
    %v1058 = vpop.permute.xlu0 %1057
    %1059 = vrot.lane.b32.xlu0 %v1034, 64
    %v1060 = vpop.permute.xlu0 %1059
    %1061 = vrot.lane.b32.xlu0 %v1035, 64
    %v1062 = vpop.permute.xlu0 %1061
    %1063 = vrot.lane.b32.xlu0 %v1036, 64
    %v1064 = vpop.permute.xlu0 %1063
    %v1069 = vsel %vm509, %v1025, %v1042
    %v1070 = vsel %vm509, %v1026, %v1044
    %v1071 = vsel %vm509, %v1027, %v1046
    %v1072 = vsel %vm509, %v1028, %v1048
    %v1073 = vsel %vm585, %v1069, %v1058
    %v1074 = vsel %vm585, %v1070, %v1060
    %v1075 = vsel %vm585, %v1071, %v1062
    %v1076 = vsel %vm585, %v1072, %v1064
    %1077 = vst.msk [vmem:[#allocation2] sm:$0xff] %vm590, %v1073
    %1078 = vst.msk [vmem:[#allocation2 + $0x8] sm:$0xff] %vm590, %v1074
    %1079 = vst.msk [vmem:[#allocation2 + $0x10] sm:$0xff] %vm590, %v1075
    %vm1080 = vcmask 782336
    %1081 = vst.msk [vmem:[#allocation2 + $0x18] sm:$0x1f] %vm1080, %v1076
    %v1082 = vld [vmem:[#allocation4 + $0x20] sm:$0xff]
    %v1083 = vld [vmem:[#allocation4 + $0x28] sm:$0xff]
    %v1084 = vld [vmem:[#allocation4 + $0x30] sm:$0xff]
    %v1085 = vld [vmem:[#allocation4 + $0x38] sm:$0x1f]
    %v1086 = vld [vmem:[#allocation4 + $0x21] sm:$0xff]
    %v1087 = vld [vmem:[#allocation4 + $0x29] sm:$0xff]
    %v1088 = vld [vmem:[#allocation4 + $0x31] sm:$0xff]
    %v1089 = vld [vmem:[#allocation4 + $0x39] sm:$0x1f]
    %v1090 = vld [vmem:[#allocation4 + $0x22] sm:$0xff]
    %v1091 = vld [vmem:[#allocation4 + $0x2a] sm:$0xff]
    %v1092 = vld [vmem:[#allocation4 + $0x32] sm:$0xff]
    %v1093 = vld [vmem:[#allocation4 + $0x3a] sm:$0x1f]
    %1098 = vrot.lane.b32.xlu0 %v1086, 32
    %v1099 = vpop.permute.xlu0 %1098
    %1100 = vrot.lane.b32.xlu0 %v1087, 32
    %v1101 = vpop.permute.xlu0 %1100
    %1102 = vrot.lane.b32.xlu0 %v1088, 32
    %v1103 = vpop.permute.xlu0 %1102
    %1104 = vrot.lane.b32.xlu0 %v1089, 32
    %v1105 = vpop.permute.xlu0 %1104
    %1114 = vrot.lane.b32.xlu0 %v1090, 64
    %v1115 = vpop.permute.xlu0 %1114
    %1116 = vrot.lane.b32.xlu0 %v1091, 64
    %v1117 = vpop.permute.xlu0 %1116
    %1118 = vrot.lane.b32.xlu0 %v1092, 64
    %v1119 = vpop.permute.xlu0 %1118
    %1120 = vrot.lane.b32.xlu0 %v1093, 64
    %v1121 = vpop.permute.xlu0 %1120
    %v1126 = vsel %vm509, %v1082, %v1099
    %v1127 = vsel %vm509, %v1083, %v1101
    %v1128 = vsel %vm509, %v1084, %v1103
    %v1129 = vsel %vm509, %v1085, %v1105
    %v1130 = vsel %vm585, %v1126, %v1115
    %v1131 = vsel %vm585, %v1127, %v1117
    %v1132 = vsel %vm585, %v1128, %v1119
    %v1133 = vsel %vm585, %v1129, %v1121
    %1134 = vst.msk [vmem:[#allocation2 + $0x20] sm:$0xff] %vm590, %v1130
    %1135 = vst.msk [vmem:[#allocation2 + $0x28] sm:$0xff] %vm590, %v1131
    %1136 = vst.msk [vmem:[#allocation2 + $0x30] sm:$0xff] %vm590, %v1132
    %1137 = vst.msk [vmem:[#allocation2 + $0x38] sm:$0x1f] %vm1080, %v1133
    %v1138 = vld [vmem:[#allocation2] sm:$0xff]
    %v1139 = vld [vmem:[#allocation2 + $0x8] sm:$0xff]
    %v1140 = vld [vmem:[#allocation2 + $0x10] sm:$0xff]
    %v1141 = vld [vmem:[#allocation2 + $0x18] sm:$0xff]
    %v1142 = vld [vmem:[#allocation2 + $0x20] sm:$0xff]
    %v1143 = vld [vmem:[#allocation2 + $0x28] sm:$0xff]
    %v1144 = vld [vmem:[#allocation2 + $0x30] sm:$0xff]
    %v1145 = vld [vmem:[#allocation2 + $0x38] sm:$0xff]
    %v1146 = vpack.c.bf16 %v1139, %v1138
    %v1147 = vpack.c.bf16 %v1141, %v1140
    %v1148 = vpack.c.bf16 %v1143, %v1142
    %v1149 = vpack.c.bf16 %v1145, %v1144
    %v1150 = vld [vmem:[%s5] sm:$0xf]
    %v1151 = vld [vmem:[%s5 + $0x4] sm:$0xf]
    %v1152 = vld [vmem:[%s5 + $0x8] sm:$0xf]
    %v1153 = vld [vmem:[%s5 + $0xc] sm:$0xf]
    %v1154 = vld [vmem:[%s5 + $0x10] sm:$0xf]
    %v1155 = vld [vmem:[%s5 + $0x14] sm:$0xf]
    %v1156 = vld [vmem:[%s5 + $0x18] sm:$0xf]
    %v1157 = vld [vmem:[%s5 + $0x1c] sm:$0xf]
    %v1158 = vld [vmem:[%s5 + $0x20] sm:$0xf]
    %v1159 = vld [vmem:[%s5 + $0x24] sm:$0xf]
    %v1160 = vld [vmem:[%s5 + $0x28] sm:$0xf]
    %v1161 = vld [vmem:[%s5 + $0x2c] sm:$0xf]
    %v1162 = vld [vmem:[%s6] sm:$0x1]
    %v1164 = vlaneseq
    %v1165 = vshrl.u32 %v1164, 7
    %v1166 = vsub.s32 0, %v1165
    %v1167 = vrot.slane %v1162, %v1166
    %v1181 = vunpack.c.l.b16 %v1150
    %v1182 = vunpack.c.l.b16 %v1151
    %v1183 = vunpack.c.l.b16 %v1152
    %v1184 = vunpack.c.l.b16 %v1153
    %v1185 = vunpack.c.l.b16 %v1154
    %v1186 = vunpack.c.l.b16 %v1155
    %v1187 = vunpack.c.l.b16 %v1156
    %v1188 = vunpack.c.l.b16 %v1157
    %v1189 = vunpack.c.l.b16 %v1158
    %v1190 = vunpack.c.l.b16 %v1159
    %v1191 = vunpack.c.l.b16 %v1160
    %v1192 = vunpack.c.l.b16 %v1161
    %v1193 = vpack.c.b16 %v1182, %v1181
    %v1194 = vpack.c.b16 %v1184, %v1183
    %v1195 = vpack.c.b16 %v1186, %v1185
    %v1196 = vpack.c.b16 %v1188, %v1187
    %v1197 = vpack.c.b16 %v1190, %v1189
    %v1198 = vpack.c.b16 %v1192, %v1191
    %v1206 = vsel %vm590, %v1146, 0
    %v1209 = vsel %vm590, %v1147, 0
    %v1212 = vsel %vm590, %v1148, 0
    %v1215 = vsel %vm590, %v1149, 0
    %1217 = vmatprep.subr.bf16.mxu0 0
    %1218 = vmatpush1.bf16.msra.mxu0 0
    %1219 = vmatprep.subr.bf16.mxu0 0
    %1220 = vmatpush1.bf16.msra.mxu0 0
    %1221 = vmatprep.subr.bf16.mxu0 0
    %1222 = vmatpush1.bf16.msra.mxu0 %v1198
    %1223 = vmatprep.subr.bf16.mxu0 0
    %1224 = vmatpush1.bf16.msra.mxu0 %v1197
    %1225 = vmatprep.subr.bf16.mxu0 0
    %1226 = vmatpush1.bf16.msra.mxu0 %v1196
    %1227 = vmatprep.subr.bf16.mxu0 0
    %1228 = vmatpush1.bf16.msra.mxu0 %v1195
    %1229 = vmatprep.subr.bf16.mxu0 0
    %1230 = vmatpush1.bf16.msra.mxu0 %v1194
    %1231 = vmatprep.subr.bf16.mxu0 0
    %1232 = vmatpush1.bf16.msra.mxu0 %v1193
    %1233 = vmatprep.subr.bf16.mxu0 0
    %1234 = vmatpush2.bf16.msra.mxu0 0
    %1235 = vmatprep.subr.bf16.mxu0 0
    %1236 = vmatpush2.bf16.msra.mxu0 0
    %1237 = vmatprep.subr.bf16.mxu0 0
    %1238 = vmatpush2.bf16.msra.mxu0 0
    %1239 = vmatprep.subr.bf16.mxu0 0
    %1240 = vmatpush2.bf16.msra.mxu0 0
    %1241 = vmatprep.subr.bf16.mxu0 0
    %1242 = vmatpush2.bf16.msra.mxu0 0
    %1243 = vmatprep.subr.bf16.mxu0 0
    %1244 = vmatpush2.bf16.msra.mxu0 0
    %1245 = vmatprep.subr.bf16.mxu0 0
    %1246 = vmatpush2.bf16.msra.mxu0 0
    %1247 = vmatprep.subr.bf16.mxu0 0
    %1248 = vmatpush2.bf16.msra.mxu0 0
    %1249 = vmatprep.mubr.bf16.mxu0 0
    %1250 = vmatmul.mubr.bf16.gmra.mxu0 %v1206
    %v1251 = vpop.f32.mrf.mxu0
    %v1252 = vadd.f32 %v1167, %v1251
    %v1253 = vpop.f32.mrf.mxu0
    %v1254 = vpop.f32.mrf.mxu0
    %v1255 = vadd.f32 %v1167, %v1254
    %v1256 = vpop.f32.mrf.mxu0
    %1257 = vmatprep.mubr.bf16.mxu0 0
    %1258 = vmatmul.mubr.bf16.gmra.mxu0 %v1209
    %v1259 = vpop.f32.mrf.mxu0
    %v1260 = vadd.f32 %v1167, %v1259
    %v1261 = vpop.f32.mrf.mxu0
    %v1262 = vpop.f32.mrf.mxu0
    %v1263 = vadd.f32 %v1167, %v1262
    %v1264 = vpop.f32.mrf.mxu0
    %1265 = vmatprep.mubr.bf16.mxu0 0
    %1266 = vmatmul.mubr.bf16.gmra.mxu0 %v1212
    %v1267 = vpop.f32.mrf.mxu0
    %v1268 = vadd.f32 %v1167, %v1267
    %v1269 = vpop.f32.mrf.mxu0
    %v1270 = vpop.f32.mrf.mxu0
    %v1271 = vadd.f32 %v1167, %v1270
    %v1272 = vpop.f32.mrf.mxu0
    %1273 = vmatprep.mubr.bf16.mxu0 0
    %1274 = vmatmul.mubr.bf16.gmra.mxu0 %v1215
    %v1275 = vpop.f32.mrf.mxu0
    %v1276 = vadd.f32 %v1167, %v1275
    %v1277 = vpop.f32.mrf.mxu0
    %v1278 = vpop.f32.mrf.mxu0
    %v1279 = vadd.f32 %v1167, %v1278
    %v1280 = vpop.f32.mrf.mxu0
    %1281 = vdwg.mxu0
    %v1282 = vmax.f32 %v1252, 0.0
    %v1283 = vmax.f32 %v1255, 0.0
    %v1284 = vmax.f32 %v1260, 0.0
    %v1285 = vmax.f32 %v1263, 0.0
    %v1286 = vmax.f32 %v1268, 0.0
    %v1287 = vmax.f32 %v1271, 0.0
    %v1288 = vmax.f32 %v1276, 0.0
    %v1289 = vmax.f32 %v1279, 0.0
    %1290 = vst.msk [vmem:[#allocation4] sm:$0xff] %vm509, %v1282
    %1291 = vst.msk [vmem:[#allocation4 + $0x8] sm:$0xff] %vm509, %v1283
    %1292 = vst.msk [vmem:[#allocation4 + $0x10] sm:$0xff] %vm509, %v1284
    %1293 = vst.msk [vmem:[#allocation4 + $0x18] sm:$0xff] %vm509, %v1285
    %1294 = vst.msk [vmem:[#allocation4 + $0x20] sm:$0xff] %vm509, %v1286
    %1295 = vst.msk [vmem:[#allocation4 + $0x28] sm:$0xff] %vm509, %v1287
    %1296 = vst.msk [vmem:[#allocation4 + $0x30] sm:$0xff] %vm509, %v1288
    %1297 = vst.msk [vmem:[#allocation4 + $0x38] sm:$0xff] %vm509, %v1289
    %v1298 = vld [vmem:[#allocation4] ss:$2 sm:$0xff]
    %s1299 = scalar_lea.vmem [#allocation4], 16
    %v1300 = vld [vmem:[%s1299] ss:$2 sm:$0x3f]
    %s1301 = scalar_lea.vmem [#allocation4], 1
    %v1302 = vld [vmem:[%s1301] ss:$2 sm:$0xff]
    %s1303 = scalar_lea.vmem [#allocation4], 17
    %v1304 = vld [vmem:[%s1303] ss:$2 sm:$0x3f]
    %v1305 = vmax.f32 %v1298, %v1302
    %v1306 = vmax.f32 %v1300, %v1304
    %s1307 = scalar_lea.vmem [#allocation4], 2
    %v1308 = vld [vmem:[%s1307] ss:$2 sm:$0xff]
    %s1309 = scalar_lea.vmem [#allocation4], 18
    %v1310 = vld [vmem:[%s1309] ss:$2 sm:$0x3f]
    %v1311 = vmax.f32 %v1305, %v1308
    %v1312 = vmax.f32 %v1306, %v1310
    %1313 = vst.msk [vmem:[#allocation5] sm:$0xff] %vm509, %v1311
    %vm1314 = vcmask 259072
    %1315 = vst.msk [vmem:[#allocation5 + $0x8] sm:$0x3f] %vm1314, %v1312
    %s1316 = scalar_lea.vmem [#allocation4], 32
    %v1317 = vld [vmem:[%s1316] ss:$2 sm:$0xff]
    %s1318 = scalar_lea.vmem [#allocation4], 48
    %v1319 = vld [vmem:[%s1318] ss:$2 sm:$0x3f]
    %s1320 = scalar_lea.vmem [#allocation4], 33
    %v1321 = vld [vmem:[%s1320] ss:$2 sm:$0xff]
    %s1322 = scalar_lea.vmem [#allocation4], 49
    %v1323 = vld [vmem:[%s1322] ss:$2 sm:$0x3f]
    %v1324 = vmax.f32 %v1317, %v1321
    %v1325 = vmax.f32 %v1319, %v1323
    %s1326 = scalar_lea.vmem [#allocation4], 34
    %v1327 = vld [vmem:[%s1326] ss:$2 sm:$0xff]
    %s1328 = scalar_lea.vmem [#allocation4], 50
    %v1329 = vld [vmem:[%s1328] ss:$2 sm:$0x3f]
    %v1330 = vmax.f32 %v1324, %v1327
    %v1331 = vmax.f32 %v1325, %v1329
    %1332 = vst.msk [vmem:[#allocation5 + $0x10] sm:$0xff] %vm509, %v1330
    %1333 = vst.msk [vmem:[#allocation5 + $0x18] sm:$0x3f] %vm1314, %v1331
    %v1334 = vld [vmem:[#allocation5] sm:$0xff]
    %v1335 = vld [vmem:[#allocation5 + $0x8] sm:$0xf]
    %v1336 = vld [vmem:[#allocation5 + $0x1] sm:$0xff]
    %v1337 = vld [vmem:[#allocation5 + $0x9] sm:$0xf]
    %v1338 = vld [vmem:[#allocation5 + $0x2] sm:$0xff]
    %v1339 = vld [vmem:[#allocation5 + $0xa] sm:$0xf]
    %1342 = vrot.lane.b32.xlu0 %v1336, 32
    %v1343 = vpop.permute.xlu0 %1342
    %1344 = vrot.lane.b32.xlu0 %v1337, 32
    %v1345 = vpop.permute.xlu0 %1344
    %1350 = vrot.lane.b32.xlu0 %v1338, 64
    %v1351 = vpop.permute.xlu0 %1350
    %1352 = vrot.lane.b32.xlu0 %v1339, 64
    %v1353 = vpop.permute.xlu0 %1352
    %v1356 = vsel %vm509, %v1334, %v1343
    %v1357 = vsel %vm509, %v1335, %v1345
    %v1358 = vsel %vm585, %v1356, %v1351
    %v1359 = vsel %vm585, %v1357, %v1353
    %1360 = vst.msk [vmem:[#allocation2] sm:$0xff] %vm590, %v1358
    %vm1361 = vcmask 781312
    %1362 = vst.msk [vmem:[#allocation2 + $0x8] sm:$0xf] %vm1361, %v1359
    %v1363 = vld [vmem:[#allocation5 + $0x10] sm:$0xff]
    %v1364 = vld [vmem:[#allocation5 + $0x18] sm:$0xf]
    %v1365 = vld [vmem:[#allocation5 + $0x11] sm:$0xff]
    %v1366 = vld [vmem:[#allocation5 + $0x19] sm:$0xf]
    %v1367 = vld [vmem:[#allocation5 + $0x12] sm:$0xff]
    %v1368 = vld [vmem:[#allocation5 + $0x1a] sm:$0xf]
    %1371 = vrot.lane.b32.xlu0 %v1365, 32
    %v1372 = vpop.permute.xlu0 %1371
    %1373 = vrot.lane.b32.xlu0 %v1366, 32
    %v1374 = vpop.permute.xlu0 %1373
    %1379 = vrot.lane.b32.xlu0 %v1367, 64
    %v1380 = vpop.permute.xlu0 %1379
    %1381 = vrot.lane.b32.xlu0 %v1368, 64
    %v1382 = vpop.permute.xlu0 %1381
    %v1385 = vsel %vm509, %v1363, %v1372
    %v1386 = vsel %vm509, %v1364, %v1374
    %v1387 = vsel %vm585, %v1385, %v1380
    %v1388 = vsel %vm585, %v1386, %v1382
    %1389 = vst.msk [vmem:[#allocation2 + $0x10] sm:$0xff] %vm590, %v1387
    %1390 = vst.msk [vmem:[#allocation2 + $0x18] sm:$0xf] %vm1361, %v1388
    %v1391 = vld [vmem:[#allocation2] sm:$0xff]
    %v1392 = vld [vmem:[#allocation2 + $0x8] sm:$0xff]
    %v1393 = vld [vmem:[#allocation2 + $0x10] sm:$0xff]
    %v1394 = vld [vmem:[#allocation2 + $0x18] sm:$0xff]
    %v1395 = vpack.c.bf16 %v1392, %v1391
    %v1396 = vpack.c.bf16 %v1394, %v1393
    %v1397 = vld [vmem:[%s7] sm:$0xf]
    %v1398 = vld [vmem:[%s7 + $0x4] sm:$0xf]
    %v1399 = vld [vmem:[%s7 + $0x8] sm:$0xf]
    %v1400 = vld [vmem:[%s7 + $0xc] sm:$0xf]
    %v1401 = vld [vmem:[%s7 + $0x10] sm:$0xf]
    %v1402 = vld [vmem:[%s7 + $0x14] sm:$0xf]
    %v1403 = vld [vmem:[%s7 + $0x18] sm:$0xf]
    %v1404 = vld [vmem:[%s7 + $0x1c] sm:$0xf]
    %v1405 = vld [vmem:[%s7 + $0x20] sm:$0xf]
    %v1406 = vld [vmem:[%s7 + $0x24] sm:$0xf]
    %v1407 = vld [vmem:[%s7 + $0x28] sm:$0xf]
    %v1408 = vld [vmem:[%s7 + $0x2c] sm:$0xf]
    %v1409 = vld [vmem:[%s8] sm:$0x1]
    %v1411 = vlaneseq
    %v1412 = vshrl.u32 %v1411, 7
    %v1413 = vsub.s32 0, %v1412
    %v1414 = vrot.slane %v1409, %v1413
    %v1428 = vunpack.c.l.b16 %v1397
    %v1429 = vunpack.c.l.b16 %v1398
    %v1430 = vunpack.c.l.b16 %v1399
    %v1431 = vunpack.c.l.b16 %v1400
    %v1432 = vunpack.c.l.b16 %v1401
    %v1433 = vunpack.c.l.b16 %v1402
    %v1434 = vunpack.c.l.b16 %v1403
    %v1435 = vunpack.c.l.b16 %v1404
    %v1436 = vunpack.c.l.b16 %v1405
    %v1437 = vunpack.c.l.b16 %v1406
    %v1438 = vunpack.c.l.b16 %v1407
    %v1439 = vunpack.c.l.b16 %v1408
    %v1440 = vpack.c.b16 %v1429, %v1428
    %v1441 = vpack.c.b16 %v1431, %v1430
    %v1442 = vpack.c.b16 %v1433, %v1432
    %v1443 = vpack.c.b16 %v1435, %v1434
    %v1444 = vpack.c.b16 %v1437, %v1436
    %v1445 = vpack.c.b16 %v1439, %v1438
    %v1453 = vsel %vm590, %v1395, 0
    %v1456 = vsel %vm590, %v1396, 0
    %1458 = vmatprep.subr.bf16.mxu0 0
    %1459 = vmatpush1.bf16.msra.mxu0 0
    %1460 = vmatprep.subr.bf16.mxu0 0
    %1461 = vmatpush1.bf16.msra.mxu0 0
    %1462 = vmatprep.subr.bf16.mxu0 0
    %1463 = vmatpush1.bf16.msra.mxu0 %v1445
    %1464 = vmatprep.subr.bf16.mxu0 0
    %1465 = vmatpush1.bf16.msra.mxu0 %v1444
    %1466 = vmatprep.subr.bf16.mxu0 0
    %1467 = vmatpush1.bf16.msra.mxu0 %v1443
    %1468 = vmatprep.subr.bf16.mxu0 0
    %1469 = vmatpush1.bf16.msra.mxu0 %v1442
    %1470 = vmatprep.subr.bf16.mxu0 0
    %1471 = vmatpush1.bf16.msra.mxu0 %v1441
    %1472 = vmatprep.subr.bf16.mxu0 0
    %1473 = vmatpush1.bf16.msra.mxu0 %v1440
    %1474 = vmatprep.subr.bf16.mxu0 0
    %1475 = vmatpush2.bf16.msra.mxu0 0
    %1476 = vmatprep.subr.bf16.mxu0 0
    %1477 = vmatpush2.bf16.msra.mxu0 0
    %1478 = vmatprep.subr.bf16.mxu0 0
    %1479 = vmatpush2.bf16.msra.mxu0 0
    %1480 = vmatprep.subr.bf16.mxu0 0
    %1481 = vmatpush2.bf16.msra.mxu0 0
    %1482 = vmatprep.subr.bf16.mxu0 0
    %1483 = vmatpush2.bf16.msra.mxu0 0
    %1484 = vmatprep.subr.bf16.mxu0 0
    %1485 = vmatpush2.bf16.msra.mxu0 0
    %1486 = vmatprep.subr.bf16.mxu0 0
    %1487 = vmatpush2.bf16.msra.mxu0 0
    %1488 = vmatprep.subr.bf16.mxu0 0
    %1489 = vmatpush2.bf16.msra.mxu0 0
    %1490 = vmatprep.mubr.bf16.mxu0 0
    %1491 = vmatmul.mubr.bf16.gmra.mxu0 %v1453
    %v1492 = vpop.f32.mrf.mxu0
    %v1493 = vadd.f32 %v1414, %v1492
    %v1494 = vpop.f32.mrf.mxu0
    %v1495 = vpop.f32.mrf.mxu0
    %v1496 = vadd.f32 %v1414, %v1495
    %v1497 = vpop.f32.mrf.mxu0
    %1498 = vmatprep.mubr.bf16.mxu0 0
    %1499 = vmatmul.mubr.bf16.gmra.mxu0 %v1456
    %v1500 = vpop.f32.mrf.mxu0
    %v1501 = vadd.f32 %v1414, %v1500
    %v1502 = vpop.f32.mrf.mxu0
    %v1503 = vpop.f32.mrf.mxu0
    %v1504 = vadd.f32 %v1414, %v1503
    %v1505 = vpop.f32.mrf.mxu0
    %1506 = vdwg.mxu0
    %v1507 = vmax.f32 %v1493, 0.0
    %v1508 = vmax.f32 %v1496, 0.0
    %v1509 = vmax.f32 %v1501, 0.0
    %v1510 = vmax.f32 %v1504, 0.0
    %v1511 = vmul.f32 %v1507, %v1507
    %v1512 = vmul.f32 %v1508, %v1508
    %v1513 = vmul.f32 %v1509, %v1509
    %v1514 = vmul.f32 %v1510, %v1510
    %v1515 = vpack.c.bf16 %v1512, %v1511
    %v1516 = vpack.c.bf16 %v1514, %v1513
    %v1517 = vld [vmem:[%s13] sm:$0xf]
    %v1518 = vld [vmem:[%s13 + $0x4] sm:$0xf]
    %v1519 = vld [vmem:[%s13 + $0x8] sm:$0xf]
    %v1520 = vld [vmem:[%s13 + $0xc] sm:$0xf]
    %v1525 = vunpack.c.l.b16 %v1517
    %v1526 = vunpack.c.l.b16 %v1518
    %v1527 = vunpack.c.l.b16 %v1519
    %v1528 = vunpack.c.l.b16 %v1520
    %v1529 = vpack.c.b16 %v1526, %v1525
    %v1530 = vpack.c.b16 %v1528, %v1527
    %v1534 = vsel %vm509, %v1515, 0
    %v1537 = vsel %vm509, %v1516, 0
    %1539 = vmatprep.subr.bf16.mxu0 0
    %1540 = vmatpush1.bf16.msra.mxu0 0
    %1541 = vmatprep.subr.bf16.mxu0 0
    %1542 = vmatpush1.bf16.msra.mxu0 0
    %1543 = vmatprep.subr.bf16.mxu0 0
    %1544 = vmatpush1.bf16.msra.mxu0 0
    %1545 = vmatprep.subr.bf16.mxu0 0
    %1546 = vmatpush1.bf16.msra.mxu0 0
    %1547 = vmatprep.subr.bf16.mxu0 0
    %1548 = vmatpush1.bf16.msra.mxu0 0
    %1549 = vmatprep.subr.bf16.mxu0 0
    %1550 = vmatpush1.bf16.msra.mxu0 0
    %1551 = vmatprep.subr.bf16.mxu0 0
    %1552 = vmatpush1.bf16.msra.mxu0 %v1530
    %1553 = vmatprep.subr.bf16.mxu0 0
    %1554 = vmatpush1.bf16.msra.mxu0 %v1529
    %1555 = vmatprep.subr.bf16.mxu0 0
    %1556 = vmatpush2.bf16.msra.mxu0 0
    %1557 = vmatprep.subr.bf16.mxu0 0
    %1558 = vmatpush2.bf16.msra.mxu0 0
    %1559 = vmatprep.subr.bf16.mxu0 0
    %1560 = vmatpush2.bf16.msra.mxu0 0
    %1561 = vmatprep.subr.bf16.mxu0 0
    %1562 = vmatpush2.bf16.msra.mxu0 0
    %1563 = vmatprep.subr.bf16.mxu0 0
    %1564 = vmatpush2.bf16.msra.mxu0 0
    %1565 = vmatprep.subr.bf16.mxu0 0
    %1566 = vmatpush2.bf16.msra.mxu0 0
    %1567 = vmatprep.subr.bf16.mxu0 0
    %1568 = vmatpush2.bf16.msra.mxu0 0
    %1569 = vmatprep.subr.bf16.mxu0 0
    %1570 = vmatpush2.bf16.msra.mxu0 0
    %1571 = vmatprep.mubr.bf16.mxu0 0
    %1572 = vmatmul.mubr.bf16.gmra.mxu0 %v1534
    %v1573 = vpop.f32.mrf.mxu0
    %v1574 = vadd.f32 0.0, %v1573
    %v1575 = vpop.f32.mrf.mxu0
    %v1576 = vpop.f32.mrf.mxu0
    %v1577 = vadd.f32 0.0, %v1576
    %v1578 = vpop.f32.mrf.mxu0
    %1579 = vmatprep.mubr.bf16.mxu0 0
    %1580 = vmatmul.mubr.bf16.gmra.mxu0 %v1537
    %v1581 = vpop.f32.mrf.mxu0
    %v1582 = vadd.f32 0.0, %v1581
    %v1583 = vpop.f32.mrf.mxu0
    %v1584 = vpop.f32.mrf.mxu0
    %v1585 = vadd.f32 0.0, %v1584
    %v1586 = vpop.f32.mrf.mxu0
    %1587 = vdwg.mxu0
    %v1588 = vmul.f32 %v1574, 4e-05
    %v1589 = vmul.f32 %v1577, 4e-05
    %v1590 = vmul.f32 %v1582, 4e-05
    %v1591 = vmul.f32 %v1585, 4e-05
    %v1592 = vadd.f32 %v1588, 1.0
    %v1593 = vadd.f32 %v1589, 1.0
    %v1594 = vadd.f32 %v1590, 1.0
    %v1595 = vadd.f32 %v1591, 1.0
    %v1596 = vrsqrt.pop %v1592
    %v1597 = vrsqrt.pop %v1593
    %v1598 = vrsqrt.pop %v1594
    %v1599 = vrsqrt.pop %v1595
    %v1600 = vrsqrt.pop %v1596
    %v1601 = vmul.f32 %v1596, %v1600
    %vm1602 = vcmp.eq.f32.partialorder %v1596, inf
    %v1603 = vsel %vm1602, %v1596, %v1601
    %vm1604 = vcmp.eq.f32.partialorder %v1596, 0.0
    %v1605 = vand.u32 %v1596, 2147483648
    %v1606 = vsel %vm1604, %v1605, %v1603
    %v1607 = vrsqrt.pop %v1597
    %v1608 = vmul.f32 %v1597, %v1607
    %vm1609 = vcmp.eq.f32.partialorder %v1597, inf
    %v1610 = vsel %vm1609, %v1597, %v1608
    %vm1611 = vcmp.eq.f32.partialorder %v1597, 0.0
    %v1612 = vand.u32 %v1597, 2147483648
    %v1613 = vsel %vm1611, %v1612, %v1610
    %v1614 = vrsqrt.pop %v1598
    %v1615 = vmul.f32 %v1598, %v1614
    %vm1616 = vcmp.eq.f32.partialorder %v1598, inf
    %v1617 = vsel %vm1616, %v1598, %v1615
    %vm1618 = vcmp.eq.f32.partialorder %v1598, 0.0
    %v1619 = vand.u32 %v1598, 2147483648
    %v1620 = vsel %vm1618, %v1619, %v1617
    %v1621 = vrsqrt.pop %v1599
    %v1622 = vmul.f32 %v1599, %v1621
    %vm1623 = vcmp.eq.f32.partialorder %v1599, inf
    %v1624 = vsel %vm1623, %v1599, %v1622
    %vm1625 = vcmp.eq.f32.partialorder %v1599, 0.0
    %v1626 = vand.u32 %v1599, 2147483648
    %v1627 = vsel %vm1625, %v1626, %v1624
    %v1628 = vmul.f32 %v1596, %v1606
    %v1629 = vmul.f32 %v1597, %v1613
    %v1630 = vmul.f32 %v1598, %v1620
    %v1631 = vmul.f32 %v1599, %v1627
    %v1632 = vmul.f32 %v1507, %v1628
    %v1633 = vmul.f32 %v1508, %v1629
    %v1634 = vmul.f32 %v1509, %v1630
    %v1635 = vmul.f32 %v1510, %v1631
    %1636 = vst.msk [vmem:[#allocation5] sm:$0xff] %vm509, %v1632
    %1637 = vst.msk [vmem:[#allocation5 + $0x8] sm:$0xff] %vm509, %v1633
    %1638 = vst.msk [vmem:[#allocation5 + $0x10] sm:$0xff] %vm509, %v1634
    %1639 = vst.msk [vmem:[#allocation5 + $0x18] sm:$0xff] %vm509, %v1635
    %v1640 = vld [vmem:[#allocation5] sm:$0xff]
    %v1641 = vld [vmem:[#allocation5 + $0x8] sm:$0x3]
    %v1642 = vld [vmem:[#allocation5 + $0x1] sm:$0xff]
    %v1643 = vld [vmem:[#allocation5 + $0x9] sm:$0x3]
    %v1644 = vld [vmem:[#allocation5 + $0x2] sm:$0xff]
    %v1645 = vld [vmem:[#allocation5 + $0xa] sm:$0x3]
    %1648 = vrot.lane.b32.xlu0 %v1642, 32
    %v1649 = vpop.permute.xlu0 %1648
    %1650 = vrot.lane.b32.xlu0 %v1643, 32
    %v1651 = vpop.permute.xlu0 %1650
    %1656 = vrot.lane.b32.xlu0 %v1644, 64
    %v1657 = vpop.permute.xlu0 %1656
    %1658 = vrot.lane.b32.xlu0 %v1645, 64
    %v1659 = vpop.permute.xlu0 %1658
    %v1662 = vsel %vm509, %v1640, %v1649
    %v1663 = vsel %vm509, %v1641, %v1651
    %v1664 = vsel %vm585, %v1662, %v1657
    %v1665 = vsel %vm585, %v1663, %v1659
    %1666 = vst.msk [vmem:[#allocation2] sm:$0xff] %vm590, %v1664
    %vm1667 = vcmask 779264
    %1668 = vst.msk [vmem:[#allocation2 + $0x8] sm:$0x3] %vm1667, %v1665
    %v1669 = vld [vmem:[#allocation5 + $0x10] sm:$0xff]
    %v1670 = vld [vmem:[#allocation5 + $0x18] sm:$0x3]
    %v1671 = vld [vmem:[#allocation5 + $0x11] sm:$0xff]
    %v1672 = vld [vmem:[#allocation5 + $0x19] sm:$0x3]
    %v1673 = vld [vmem:[#allocation5 + $0x12] sm:$0xff]
    %v1674 = vld [vmem:[#allocation5 + $0x1a] sm:$0x3]
    %1677 = vrot.lane.b32.xlu0 %v1671, 32
    %v1678 = vpop.permute.xlu0 %1677
    %1679 = vrot.lane.b32.xlu0 %v1672, 32
    %v1680 = vpop.permute.xlu0 %1679
    %1685 = vrot.lane.b32.xlu0 %v1673, 64
    %v1686 = vpop.permute.xlu0 %1685
    %1687 = vrot.lane.b32.xlu0 %v1674, 64
    %v1688 = vpop.permute.xlu0 %1687
    %v1691 = vsel %vm509, %v1669, %v1678
    %v1692 = vsel %vm509, %v1670, %v1680
    %v1693 = vsel %vm585, %v1691, %v1686
    %v1694 = vsel %vm585, %v1692, %v1688
    %1695 = vst.msk [vmem:[#allocation2 + $0x10] sm:$0xff] %vm590, %v1693
    %1696 = vst.msk [vmem:[#allocation2 + $0x18] sm:$0x3] %vm1667, %v1694
    %v1697 = vld [vmem:[#allocation2] sm:$0xff]
    %v1698 = vld [vmem:[#allocation2 + $0x8] sm:$0xff]
    %v1699 = vld [vmem:[#allocation2 + $0x10] sm:$0xff]
    %v1700 = vld [vmem:[#allocation2 + $0x18] sm:$0xff]
    %v1701 = vpack.c.bf16 %v1698, %v1697
    %v1702 = vpack.c.bf16 %v1700, %v1699
    %v1703 = vld [vmem:[%s9] sm:$0xf]
    %v1704 = vld [vmem:[%s9 + $0x4] sm:$0xf]
    %v1705 = vld [vmem:[%s9 + $0x8] sm:$0xf]
    %v1706 = vld [vmem:[%s9 + $0xc] sm:$0xf]
    %v1707 = vld [vmem:[%s9 + $0x10] sm:$0xf]
    %v1708 = vld [vmem:[%s9 + $0x14] sm:$0xf]
    %v1709 = vld [vmem:[%s9 + $0x18] sm:$0xf]
    %v1710 = vld [vmem:[%s9 + $0x1c] sm:$0xf]
    %v1711 = vld [vmem:[%s9 + $0x20] sm:$0xf]
    %v1712 = vld [vmem:[%s9 + $0x24] sm:$0xf]
    %v1713 = vld [vmem:[%s9 + $0x28] sm:$0xf]
    %v1714 = vld [vmem:[%s9 + $0x2c] sm:$0xf]
    %v1715 = vld [vmem:[%s10] sm:$0x1]
    %v1717 = vlaneseq
    %v1718 = vshrl.u32 %v1717, 7
    %v1719 = vsub.s32 0, %v1718
    %v1720 = vrot.slane %v1715, %v1719
    %v1734 = vunpack.c.l.b16 %v1703
    %v1735 = vunpack.c.l.b16 %v1704
    %v1736 = vunpack.c.l.b16 %v1705
    %v1737 = vunpack.c.l.b16 %v1706
    %v1738 = vunpack.c.l.b16 %v1707
    %v1739 = vunpack.c.l.b16 %v1708
    %v1740 = vunpack.c.l.b16 %v1709
    %v1741 = vunpack.c.l.b16 %v1710
    %v1742 = vunpack.c.l.b16 %v1711
    %v1743 = vunpack.c.l.b16 %v1712
    %v1744 = vunpack.c.l.b16 %v1713
    %v1745 = vunpack.c.l.b16 %v1714
    %v1746 = vpack.c.b16 %v1735, %v1734
    %v1747 = vpack.c.b16 %v1737, %v1736
    %v1748 = vpack.c.b16 %v1739, %v1738
    %v1749 = vpack.c.b16 %v1741, %v1740
    %v1750 = vpack.c.b16 %v1743, %v1742
    %v1751 = vpack.c.b16 %v1745, %v1744
    %v1759 = vsel %vm590, %v1701, 0
    %v1762 = vsel %vm590, %v1702, 0
    %1764 = vmatprep.subr.bf16.mxu0 0
    %1765 = vmatpush1.bf16.msra.mxu0 0
    %1766 = vmatprep.subr.bf16.mxu0 0
    %1767 = vmatpush1.bf16.msra.mxu0 0
    %1768 = vmatprep.subr.bf16.mxu0 0
    %1769 = vmatpush1.bf16.msra.mxu0 %v1751
    %1770 = vmatprep.subr.bf16.mxu0 0
    %1771 = vmatpush1.bf16.msra.mxu0 %v1750
    %1772 = vmatprep.subr.bf16.mxu0 0
    %1773 = vmatpush1.bf16.msra.mxu0 %v1749
    %1774 = vmatprep.subr.bf16.mxu0 0
    %1775 = vmatpush1.bf16.msra.mxu0 %v1748
    %1776 = vmatprep.subr.bf16.mxu0 0
    %1777 = vmatpush1.bf16.msra.mxu0 %v1747
    %1778 = vmatprep.subr.bf16.mxu0 0
    %1779 = vmatpush1.bf16.msra.mxu0 %v1746
    %1780 = vmatprep.subr.bf16.mxu0 0
    %1781 = vmatpush2.bf16.msra.mxu0 0
    %1782 = vmatprep.subr.bf16.mxu0 0
    %1783 = vmatpush2.bf16.msra.mxu0 0
    %1784 = vmatprep.subr.bf16.mxu0 0
    %1785 = vmatpush2.bf16.msra.mxu0 0
    %1786 = vmatprep.subr.bf16.mxu0 0
    %1787 = vmatpush2.bf16.msra.mxu0 0
    %1788 = vmatprep.subr.bf16.mxu0 0
    %1789 = vmatpush2.bf16.msra.mxu0 0
    %1790 = vmatprep.subr.bf16.mxu0 0
    %1791 = vmatpush2.bf16.msra.mxu0 0
    %1792 = vmatprep.subr.bf16.mxu0 0
    %1793 = vmatpush2.bf16.msra.mxu0 0
    %1794 = vmatprep.subr.bf16.mxu0 0
    %1795 = vmatpush2.bf16.msra.mxu0 0
    %1796 = vmatprep.mubr.bf16.mxu0 0
    %1797 = vmatmul.mubr.bf16.gmra.mxu0 %v1759
    %v1798 = vpop.f32.mrf.mxu0
    %v1799 = vadd.f32 %v1720, %v1798
    %v1800 = vpop.f32.mrf.mxu0
    %v1801 = vpop.f32.mrf.mxu0
    %v1802 = vadd.f32 %v1720, %v1801
    %v1803 = vpop.f32.mrf.mxu0
    %1804 = vmatprep.mubr.bf16.mxu0 0
    %1805 = vmatmul.mubr.bf16.gmra.mxu0 %v1762
    %v1806 = vpop.f32.mrf.mxu0
    %v1807 = vadd.f32 %v1720, %v1806
    %v1808 = vpop.f32.mrf.mxu0
    %v1809 = vpop.f32.mrf.mxu0
    %v1810 = vadd.f32 %v1720, %v1809
    %v1811 = vpop.f32.mrf.mxu0
    %1812 = vdwg.mxu0
    %v1813 = vmax.f32 %v1799, 0.0
    %v1814 = vmax.f32 %v1802, 0.0
    %v1815 = vmax.f32 %v1807, 0.0
    %v1816 = vmax.f32 %v1810, 0.0
    %1817 = vst.msk [vmem:[#allocation5] sm:$0xff] %vm509, %v1813
    %1818 = vst.msk [vmem:[#allocation5 + $0x8] sm:$0xff] %vm509, %v1814
    %1819 = vst.msk [vmem:[#allocation5 + $0x10] sm:$0xff] %vm509, %v1815
    %1820 = vst.msk [vmem:[#allocation5 + $0x18] sm:$0xff] %vm509, %v1816
    %v1821 = vld [vmem:[#allocation5] sm:$0xff]
    %v1822 = vld [vmem:[#allocation5 + $0x1] sm:$0xff]
    %v1823 = vld [vmem:[#allocation5 + $0x2] sm:$0xff]
    %1825 = vrot.lane.b32.xlu0 %v1822, 32
    %v1826 = vpop.permute.xlu0 %1825
    %1829 = vrot.lane.b32.xlu0 %v1823, 64
    %v1830 = vpop.permute.xlu0 %1829
    %v1832 = vsel %vm509, %v1821, %v1826
    %v1833 = vsel %vm585, %v1832, %v1830
    %1834 = vst.msk [vmem:[#allocation2] sm:$0xff] %vm590, %v1833
    %v1835 = vld [vmem:[#allocation5 + $0x10] sm:$0xff]
    %v1836 = vld [vmem:[#allocation5 + $0x11] sm:$0xff]
    %v1837 = vld [vmem:[#allocation5 + $0x12] sm:$0xff]
    %1839 = vrot.lane.b32.xlu0 %v1836, 32
    %v1840 = vpop.permute.xlu0 %1839
    %1843 = vrot.lane.b32.xlu0 %v1837, 64
    %v1844 = vpop.permute.xlu0 %1843
    %v1846 = vsel %vm509, %v1835, %v1840
    %v1847 = vsel %vm585, %v1846, %v1844
    %1848 = vst.msk [vmem:[#allocation2 + $0x8] sm:$0xff] %vm590, %v1847
    %v1849 = vld [vmem:[#allocation2] sm:$0xff]
    %v1850 = vld [vmem:[#allocation2 + $0x8] sm:$0xff]
    %v1851 = vpack.c.bf16 %v1850, %v1849
    %v1852 = vld [vmem:[%s11] sm:$0xf]
    %v1853 = vld [vmem:[%s11 + $0x4] sm:$0xf]
    %v1854 = vld [vmem:[%s11 + $0x8] sm:$0xf]
    %v1855 = vld [vmem:[%s11 + $0xc] sm:$0xf]
    %v1856 = vld [vmem:[%s11 + $0x10] sm:$0xf]
    %v1857 = vld [vmem:[%s11 + $0x14] sm:$0xf]
    %v1858 = vld [vmem:[%s11 + $0x18] sm:$0xf]
    %v1859 = vld [vmem:[%s11 + $0x1c] sm:$0xf]
    %v1860 = vld [vmem:[%s11 + $0x20] sm:$0xf]
    %v1861 = vld [vmem:[%s11 + $0x24] sm:$0xf]
    %v1862 = vld [vmem:[%s11 + $0x28] sm:$0xf]
    %v1863 = vld [vmem:[%s11 + $0x2c] sm:$0xf]
    %v1864 = vld [vmem:[%s12] sm:$0x1]
    %v1866 = vlaneseq
    %v1867 = vshrl.u32 %v1866, 7
    %v1868 = vsub.s32 0, %v1867
    %v1869 = vrot.slane %v1864, %v1868
    %v1883 = vunpack.c.l.b16 %v1852
    %v1884 = vunpack.c.l.b16 %v1853
    %v1885 = vunpack.c.l.b16 %v1854
    %v1886 = vunpack.c.l.b16 %v1855
    %v1887 = vunpack.c.l.b16 %v1856
    %v1888 = vunpack.c.l.b16 %v1857
    %v1889 = vunpack.c.l.b16 %v1858
    %v1890 = vunpack.c.l.b16 %v1859
    %v1891 = vunpack.c.l.b16 %v1860
    %v1892 = vunpack.c.l.b16 %v1861
    %v1893 = vunpack.c.l.b16 %v1862
    %v1894 = vunpack.c.l.b16 %v1863
    %v1895 = vpack.c.b16 %v1884, %v1883
    %v1896 = vpack.c.b16 %v1886, %v1885
    %v1897 = vpack.c.b16 %v1888, %v1887
    %v1898 = vpack.c.b16 %v1890, %v1889
    %v1899 = vpack.c.b16 %v1892, %v1891
    %v1900 = vpack.c.b16 %v1894, %v1893
    %v1908 = vsel %vm590, %v1851, 0
    %1910 = vmatprep.subr.bf16.mxu0 0
    %1911 = vmatpush1.bf16.msra.mxu0 0
    %1912 = vmatprep.subr.bf16.mxu0 0
    %1913 = vmatpush1.bf16.msra.mxu0 0
    %1914 = vmatprep.subr.bf16.mxu0 0
    %1915 = vmatpush1.bf16.msra.mxu0 %v1900
    %1916 = vmatprep.subr.bf16.mxu0 0
    %1917 = vmatpush1.bf16.msra.mxu0 %v1899
    %1918 = vmatprep.subr.bf16.mxu0 0
    %1919 = vmatpush1.bf16.msra.mxu0 %v1898
    %1920 = vmatprep.subr.bf16.mxu0 0
    %1921 = vmatpush1.bf16.msra.mxu0 %v1897
    %1922 = vmatprep.subr.bf16.mxu0 0
    %1923 = vmatpush1.bf16.msra.mxu0 %v1896
    %1924 = vmatprep.subr.bf16.mxu0 0
    %1925 = vmatpush1.bf16.msra.mxu0 %v1895
    %1926 = vmatprep.subr.bf16.mxu0 0
    %1927 = vmatpush2.bf16.msra.mxu0 0
    %1928 = vmatprep.subr.bf16.mxu0 0
    %1929 = vmatpush2.bf16.msra.mxu0 0
    %1930 = vmatprep.subr.bf16.mxu0 0
    %1931 = vmatpush2.bf16.msra.mxu0 0
    %1932 = vmatprep.subr.bf16.mxu0 0
    %1933 = vmatpush2.bf16.msra.mxu0 0
    %1934 = vmatprep.subr.bf16.mxu0 0
    %1935 = vmatpush2.bf16.msra.mxu0 0
    %1936 = vmatprep.subr.bf16.mxu0 0
    %1937 = vmatpush2.bf16.msra.mxu0 0
    %1938 = vmatprep.subr.bf16.mxu0 0
    %1939 = vmatpush2.bf16.msra.mxu0 0
    %1940 = vmatprep.subr.bf16.mxu0 0
    %1941 = vmatpush2.bf16.msra.mxu0 0
    %1942 = vmatprep.mubr.bf16.mxu0 0
    %1943 = vmatmul.mubr.bf16.gmra.mxu0 %v1908
    %v1944 = vpop.f32.mrf.mxu0
    %v1945 = vadd.f32 %v1869, %v1944
    %v1946 = vpop.f32.mrf.mxu0
    %v1947 = vpop.f32.mrf.mxu0
    %v1948 = vadd.f32 %v1869, %v1947
    %v1949 = vpop.f32.mrf.mxu0
    %1950 = vdwg.mxu0
    %v1951 = vmax.f32 %v1945, 0.0
    %v1952 = vmax.f32 %v1948, 0.0
    %v1953 = vmul.f32 %v1951, %v1951
    %v1954 = vmul.f32 %v1952, %v1952
    %v1955 = vpack.c.bf16 %v1954, %v1953
    %v1956 = vld [vmem:[%s13] sm:$0xf]
    %v1957 = vld [vmem:[%s13 + $0x4] sm:$0xf]
    %v1958 = vld [vmem:[%s13 + $0x8] sm:$0xf]
    %v1959 = vld [vmem:[%s13 + $0xc] sm:$0xf]
    %v1964 = vunpack.c.l.b16 %v1956
    %v1965 = vunpack.c.l.b16 %v1957
    %v1966 = vunpack.c.l.b16 %v1958
    %v1967 = vunpack.c.l.b16 %v1959
    %v1968 = vpack.c.b16 %v1965, %v1964
    %v1969 = vpack.c.b16 %v1967, %v1966
    %v1973 = vsel %vm509, %v1955, 0
    %1975 = vmatprep.subr.bf16.mxu0 0
    %1976 = vmatpush1.bf16.msra.mxu0 0
    %1977 = vmatprep.subr.bf16.mxu0 0
    %1978 = vmatpush1.bf16.msra.mxu0 0
    %1979 = vmatprep.subr.bf16.mxu0 0
    %1980 = vmatpush1.bf16.msra.mxu0 0
    %1981 = vmatprep.subr.bf16.mxu0 0
    %1982 = vmatpush1.bf16.msra.mxu0 0
    %1983 = vmatprep.subr.bf16.mxu0 0
    %1984 = vmatpush1.bf16.msra.mxu0 0
    %1985 = vmatprep.subr.bf16.mxu0 0
    %1986 = vmatpush1.bf16.msra.mxu0 0
    %1987 = vmatprep.subr.bf16.mxu0 0
    %1988 = vmatpush1.bf16.msra.mxu0 %v1969
    %1989 = vmatprep.subr.bf16.mxu0 0
    %1990 = vmatpush1.bf16.msra.mxu0 %v1968
    %1991 = vmatprep.subr.bf16.mxu0 0
    %1992 = vmatpush2.bf16.msra.mxu0 0
    %1993 = vmatprep.subr.bf16.mxu0 0
    %1994 = vmatpush2.bf16.msra.mxu0 0
    %1995 = vmatprep.subr.bf16.mxu0 0
    %1996 = vmatpush2.bf16.msra.mxu0 0
    %1997 = vmatprep.subr.bf16.mxu0 0
    %1998 = vmatpush2.bf16.msra.mxu0 0
    %1999 = vmatprep.subr.bf16.mxu0 0
    %2000 = vmatpush2.bf16.msra.mxu0 0
    %2001 = vmatprep.subr.bf16.mxu0 0
    %2002 = vmatpush2.bf16.msra.mxu0 0
    %2003 = vmatprep.subr.bf16.mxu0 0
    %2004 = vmatpush2.bf16.msra.mxu0 0
    %2005 = vmatprep.subr.bf16.mxu0 0
    %2006 = vmatpush2.bf16.msra.mxu0 0
    %2007 = vmatprep.mubr.bf16.mxu0 0
    %2008 = vmatmul.mubr.bf16.gmra.mxu0 %v1973
    %v2009 = vpop.f32.mrf.mxu0
    %v2010 = vadd.f32 0.0, %v2009
    %v2011 = vpop.f32.mrf.mxu0
    %v2012 = vpop.f32.mrf.mxu0
    %v2013 = vadd.f32 0.0, %v2012
    %v2014 = vpop.f32.mrf.mxu0
    %2015 = vdwg.mxu0
    %v2016 = vmul.f32 %v2010, 4e-05
    %v2017 = vmul.f32 %v2013, 4e-05
    %v2018 = vadd.f32 %v2016, 1.0
    %v2019 = vadd.f32 %v2017, 1.0
    %v2020 = vrsqrt.pop %v2018
    %v2021 = vrsqrt.pop %v2019
    %v2022 = vrsqrt.pop %v2020
    %v2023 = vmul.f32 %v2020, %v2022
    %vm2024 = vcmp.eq.f32.partialorder %v2020, inf
    %v2025 = vsel %vm2024, %v2020, %v2023
    %vm2026 = vcmp.eq.f32.partialorder %v2020, 0.0
    %v2027 = vand.u32 %v2020, 2147483648
    %v2028 = vsel %vm2026, %v2027, %v2025
    %v2029 = vrsqrt.pop %v2021
    %v2030 = vmul.f32 %v2021, %v2029
    %vm2031 = vcmp.eq.f32.partialorder %v2021, inf
    %v2032 = vsel %vm2031, %v2021, %v2030
    %vm2033 = vcmp.eq.f32.partialorder %v2021, 0.0
    %v2034 = vand.u32 %v2021, 2147483648
    %v2035 = vsel %vm2033, %v2034, %v2032
    %v2036 = vmul.f32 %v2020, %v2028
    %v2037 = vmul.f32 %v2021, %v2035
    %v2038 = vmul.f32 %v1951, %v2036
    %v2039 = vmul.f32 %v1952, %v2037
    %2040 = vst.msk [vmem:[#allocation5] sm:$0xff] %vm509, %v2038
    %2041 = vst.msk [vmem:[#allocation5 + $0x8] sm:$0xff] %vm509, %v2039
    %v2042 = vld [vmem:[#allocation5] ss:$8 sm:$0x3]
    %s2043 = scalar_lea.vmem [#allocation5], 1
    %v2044 = vld [vmem:[%s2043] ss:$8 sm:$0x3]
    %s2045 = scalar_lea.vmem [#allocation5], 2
    %v2046 = vld [vmem:[%s2045] ss:$8 sm:$0x3]
    %s2047 = scalar_lea.vmem [#allocation5], 3
    %v2048 = vld [vmem:[%s2047] ss:$8 sm:$0x3]
    %s2049 = scalar_lea.vmem [#allocation5], 4
    %v2050 = vld [vmem:[%s2049] ss:$8 sm:$0x3]
    %s2051 = scalar_lea.vmem [#allocation5], 5
    %v2052 = vld [vmem:[%s2051] ss:$8 sm:$0x3]
    %s2053 = scalar_lea.vmem [#allocation5], 6
    %v2054 = vld [vmem:[%s2053] ss:$8 sm:$0x3]
    %s2055 = scalar_lea.vmem [#allocation5], 7
    %v2056 = vld [vmem:[%s2055] ss:$8 sm:$0x3]
    %2058 = vrot.lane.b32.xlu0 %v2044, 32
    %v2059 = vpop.permute.xlu0 %2058
    %2062 = vrot.lane.b32.xlu0 %v2046, 64
    %v2063 = vpop.permute.xlu0 %2062
    %2066 = vrot.lane.b32.xlu0 %v2048, 96
    %v2067 = vpop.permute.xlu0 %2066
    %2070 = vrot.lane.b32.xlu0 %v2052, 32
    %v2071 = vpop.permute.xlu0 %2070
    %2074 = vrot.lane.b32.xlu0 %v2054, 64
    %v2075 = vpop.permute.xlu0 %2074
    %2078 = vrot.lane.b32.xlu0 %v2056, 96
    %v2079 = vpop.permute.xlu0 %2078
    %v2081 = vsel %vm509, %v2042, %v2059
    %v2082 = vsel %vm585, %v2081, %v2063
    %v2083 = vsel %vm590, %v2082, %v2067
    %v2084 = vsel %vm509, %v2050, %v2071
    %v2085 = vsel %vm585, %v2084, %v2075
    %v2086 = vsel %vm590, %v2085, %v2079
    %v2087 = vpack.c.bf16 %v2083, %v2083
    %v2088 = vpack.c.bf16 %v2086, %v2086
    %v2089 = vld [vmem:[%s14] sm:$0xf]
    %v2090 = vld [vmem:[%s14 + $0x4] sm:$0xf]
    %v2091 = vld [vmem:[%s14 + $0x8] sm:$0xf]
    %v2092 = vld [vmem:[%s14 + $0xc] sm:$0xf]
    %v2093 = vld [vmem:[%s14 + $0x10] sm:$0xf]
    %v2094 = vld [vmem:[%s14 + $0x14] sm:$0xf]
    %v2095 = vld [vmem:[%s14 + $0x18] sm:$0xf]
    %v2096 = vld [vmem:[%s14 + $0x1c] sm:$0xf]
    %v2097 = vld [vmem:[%s14 + $0x20] sm:$0xf]
    %v2098 = vld [vmem:[%s14 + $0x24] sm:$0xf]
    %v2099 = vld [vmem:[%s14 + $0x28] sm:$0xf]
    %v2100 = vld [vmem:[%s14 + $0x2c] sm:$0xf]
    %v2101 = vld [vmem:[%s14 + $0x30] sm:$0xf]
    %v2102 = vld [vmem:[%s14 + $0x34] sm:$0xf]
    %v2103 = vld [vmem:[%s14 + $0x38] sm:$0xf]
    %v2104 = vld [vmem:[%s14 + $0x3c] sm:$0xf]
    %v2105 = vld [vmem:[%s14 + $0x40] sm:$0xf]
    %v2106 = vld [vmem:[%s14 + $0x44] sm:$0xf]
    %v2107 = vld [vmem:[%s14 + $0x48] sm:$0xf]
    %v2108 = vld [vmem:[%s14 + $0x4c] sm:$0xf]
    %v2109 = vld [vmem:[%s14 + $0x50] sm:$0xf]
    %v2110 = vld [vmem:[%s14 + $0x54] sm:$0xf]
    %v2111 = vld [vmem:[%s14 + $0x58] sm:$0xf]
    %v2112 = vld [vmem:[%s14 + $0x5c] sm:$0xf]
    %v2113 = vld [vmem:[%s14 + $0x60] sm:$0xf]
    %v2114 = vld [vmem:[%s14 + $0x64] sm:$0xf]
    %v2115 = vld [vmem:[%s14 + $0x68] sm:$0xf]
    %v2116 = vld [vmem:[%s14 + $0x6c] sm:$0xf]
    %v2117 = vld [vmem:[%s14 + $0x70] sm:$0xf]
    %v2118 = vld [vmem:[%s14 + $0x74] sm:$0xf]
    %v2119 = vld [vmem:[%s14 + $0x78] sm:$0xf]
    %v2120 = vld [vmem:[%s14 + $0x7c] sm:$0xf]
    %v2121 = vld [vmem:[%s15] sm:$0x1]
    %v2123 = vlaneseq
    %v2124 = vshrl.u32 %v2123, 7
    %v2125 = vsub.s32 0, %v2124
    %v2126 = vrot.slane %v2121, %v2125
    %v2160 = vunpack.c.l.b16 %v2089
    %v2161 = vunpack.c.l.b16 %v2090
    %v2162 = vunpack.c.l.b16 %v2091
    %v2163 = vunpack.c.l.b16 %v2092
    %v2164 = vunpack.c.l.b16 %v2093
    %v2165 = vunpack.c.l.b16 %v2094
    %v2166 = vunpack.c.l.b16 %v2095
    %v2167 = vunpack.c.l.b16 %v2096
    %v2168 = vunpack.c.l.b16 %v2097
    %v2169 = vunpack.c.l.b16 %v2098
    %v2170 = vunpack.c.l.b16 %v2099
    %v2171 = vunpack.c.l.b16 %v2100
    %v2172 = vunpack.c.l.b16 %v2101
    %v2173 = vunpack.c.l.b16 %v2102
    %v2174 = vunpack.c.l.b16 %v2103
    %v2175 = vunpack.c.l.b16 %v2104
    %v2176 = vunpack.c.l.b16 %v2105
    %v2177 = vunpack.c.l.b16 %v2106
    %v2178 = vunpack.c.l.b16 %v2107
    %v2179 = vunpack.c.l.b16 %v2108
    %v2180 = vunpack.c.l.b16 %v2109
    %v2181 = vunpack.c.l.b16 %v2110
    %v2182 = vunpack.c.l.b16 %v2111
    %v2183 = vunpack.c.l.b16 %v2112
    %v2184 = vunpack.c.l.b16 %v2113
    %v2185 = vunpack.c.l.b16 %v2114
    %v2186 = vunpack.c.l.b16 %v2115
    %v2187 = vunpack.c.l.b16 %v2116
    %v2188 = vunpack.c.l.b16 %v2117
    %v2189 = vunpack.c.l.b16 %v2118
    %v2190 = vunpack.c.l.b16 %v2119
    %v2191 = vunpack.c.l.b16 %v2120
    %v2192 = vpack.c.b16 %v2161, %v2160
    %v2193 = vpack.c.b16 %v2163, %v2162
    %v2194 = vpack.c.b16 %v2165, %v2164
    %v2195 = vpack.c.b16 %v2167, %v2166
    %v2196 = vpack.c.b16 %v2169, %v2168
    %v2197 = vpack.c.b16 %v2171, %v2170
    %v2198 = vpack.c.b16 %v2173, %v2172
    %v2199 = vpack.c.b16 %v2175, %v2174
    %v2200 = vpack.c.b16 %v2177, %v2176
    %v2201 = vpack.c.b16 %v2179, %v2178
    %v2202 = vpack.c.b16 %v2181, %v2180
    %v2203 = vpack.c.b16 %v2183, %v2182
    %v2204 = vpack.c.b16 %v2185, %v2184
    %v2205 = vpack.c.b16 %v2187, %v2186
    %v2206 = vpack.c.b16 %v2189, %v2188
    %v2207 = vpack.c.b16 %v2191, %v2190
    %2224 = vmatprep.subr.bf16.mxu0 0
    %2225 = vmatpush1.bf16.msra.mxu0 %v2199
    %2226 = vmatprep.subr.bf16.mxu0 0
    %2227 = vmatpush1.bf16.msra.mxu0 %v2198
    %2228 = vmatprep.subr.bf16.mxu0 0
    %2229 = vmatpush1.bf16.msra.mxu0 %v2197
    %2230 = vmatprep.subr.bf16.mxu0 0
    %2231 = vmatpush1.bf16.msra.mxu0 %v2196
    %2232 = vmatprep.subr.bf16.mxu0 0
    %2233 = vmatpush1.bf16.msra.mxu0 %v2195
    %2234 = vmatprep.subr.bf16.mxu0 0
    %2235 = vmatpush1.bf16.msra.mxu0 %v2194
    %2236 = vmatprep.subr.bf16.mxu0 0
    %2237 = vmatpush1.bf16.msra.mxu0 %v2193
    %2238 = vmatprep.subr.bf16.mxu0 0
    %2239 = vmatpush1.bf16.msra.mxu0 %v2192
    %2240 = vmatprep.subr.bf16.mxu0 0
    %2241 = vmatpush2.bf16.msra.mxu0 %v2207
    %2242 = vmatprep.subr.bf16.mxu0 0
    %2243 = vmatpush2.bf16.msra.mxu0 %v2206
    %2244 = vmatprep.subr.bf16.mxu0 0
    %2245 = vmatpush2.bf16.msra.mxu0 %v2205
    %2246 = vmatprep.subr.bf16.mxu0 0
    %2247 = vmatpush2.bf16.msra.mxu0 %v2204
    %2248 = vmatprep.subr.bf16.mxu0 0
    %2249 = vmatpush2.bf16.msra.mxu0 %v2203
    %2250 = vmatprep.subr.bf16.mxu0 0
    %2251 = vmatpush2.bf16.msra.mxu0 %v2202
    %2252 = vmatprep.subr.bf16.mxu0 0
    %2253 = vmatpush2.bf16.msra.mxu0 %v2201
    %2254 = vmatprep.subr.bf16.mxu0 0
    %2255 = vmatpush2.bf16.msra.mxu0 %v2200
    %2256 = vmatprep.mubr.bf16.mxu0 %v2088
    %2257 = vmatmul.mubr.bf16.gmra.mxu0 %v2087
    %v2258 = vpop.f32.mrf.mxu0
    %v2259 = vadd.f32 %v2126, %v2258
    %v2260 = vpop.f32.mrf.mxu0
    %v2261 = vpop.f32.mrf.mxu0
    %v2262 = vpop.f32.mrf.mxu0
    %2263 = vdwg.mxu0
    %vm2264 = vcmask 33792
    %2265 = vst.msk [vmem:[#allocation6] sm:$0x3] %vm2264, %v2259
    // Predicated region
    $region66: #{deepecg_forward.1} parent=1 // pred_check
      _
    $region67: #{deepecg_forward.1} parent=1 // pred_check_branch
      %2267 = sbr.rel (0) target = $region69
    $region68: #{deepecg_forward.1} parent=1 // pred_region
      %s2269 = ssub.s32 32, 32
      %2270 = vsyncadd [#allocation7], %s2269
      %s2272 = sshll.u32 [#allocation6], 4
      %s2273 = int_to_ptr.vmem [resolvable:$true] %s2272
      %2275 = dma.vmem_to_hbm [thread:$0]  %s2273, 32, %s16, [#allocation7]
    $region69: #{deepecg_forward.1} parent=1 // pred_fallthru
      _
    // Predicated region
    $region70: #{deepecg_forward.1} parent=1 // pred_check
      _
    $region71: #{deepecg_forward.1} parent=1 // pred_check_branch
      %2277 = sbr.rel (0) target = $region73
    $region72: #{deepecg_forward.1} parent=1 // pred_region
      %2278 = dma.done [#allocation7], 32
    $region73: #{deepecg_forward.1} parent=1 // pred_fallthru
      _
    %2279 = vsyncpa [#allocation7], 1

</llo_original>
